<compile_context>
chip_gen: v5e
topology: v5e:2x2
jax: 0.10.0
libtpu: 0.0.40
codegen_flags: <defaults>
</compile_context>

<pallas_src>
import functools

import jax
import jax.numpy as jnp
from jax import lax
from jax.experimental import pallas as pl
from jax.experimental.pallas import tpu as pltpu

BF16 = jnp.bfloat16
LANE = 128  # TPU lane width; all feature dims are padded to this.


# ----------------------------------------------------------------------------
# Fused kernel: both branches unrolled in one body (single dispatch).
# ----------------------------------------------------------------------------
def _bgrl_kernel(alphas_ref,                                   # SMEM (8,) f32
                 o_adj_ref, o_x_ref, t_adj_ref, t_x_ref,       # bf16
                 o_w1_ref, o_b1_ref, o_w2_ref, o_b2_ref,       # enc (online)
                 t_w1_ref, t_b1_ref, t_w2_ref, t_b2_ref,       # enc (target)
                 p_w1_ref, p_b1_ref, p_w2_ref, p_b2_ref,       # predictor
                 q_ref, y_ref):                                # bf16 outputs

    def prelu(v, a):
        return jnp.where(v >= 0.0, v, a * v)

    def encode(adj_ref, x_ref, w1_ref, b1_ref, w2_ref, b2_ref, a1, a2):
        adj = adj_ref[...]                                     # bf16 [N, N]
        # layer 1: (adj @ x) @ w1  -> N x N matmul only produces D columns
        ax = jnp.dot(adj, x_ref[...], preferred_element_type=jnp.float32)
        h1 = jnp.dot(ax.astype(BF16), w1_ref[...],
                     preferred_element_type=jnp.float32) + b1_ref[...]
        h1 = prelu(h1, a1)                                     # f32 epilogue
        # layer 2: adj @ (h1 @ w2)
        hw = jnp.dot(h1.astype(BF16), w2_ref[...],
                     preferred_element_type=jnp.float32)
        y = jnp.dot(adj, hw.astype(BF16),
                    preferred_element_type=jnp.float32) + b2_ref[...]
        return prelu(y, a2)

    # ---- online branch: encoder + predictor ---------------------------------
    y_on = encode(o_adj_ref, o_x_ref, o_w1_ref, o_b1_ref, o_w2_ref, o_b2_ref,
                  alphas_ref[0], alphas_ref[1])
    ph = jnp.dot(y_on.astype(BF16), p_w1_ref[...],
                 preferred_element_type=jnp.float32) + p_b1_ref[...]
    ph = prelu(ph, alphas_ref[2])
    q = jnp.dot(ph.astype(BF16), p_w2_ref[...],
                preferred_element_type=jnp.float32) + p_b2_ref[...]
    q_ref[...] = q.astype(q_ref.dtype)

    # ---- target branch: encoder only ----------------------------------------
    y_t = encode(t_adj_ref, t_x_ref, t_w1_ref, t_b1_ref, t_w2_ref, t_b2_ref,
                 alphas_ref[3], alphas_ref[4])
    y_ref[...] = y_t.astype(y_ref.dtype)


# ----------------------------------------------------------------------------
# One-time preparation (done OUTSIDE the per-step forward): pad feature dims
# to 128 lanes, cast MXU operands to bf16, flatten PReLU slopes into SMEM.
# ----------------------------------------------------------------------------
def _pad2d(a, rows, cols):
    a = jnp.asarray(a)
    return jnp.pad(a, ((0, rows - a.shape[0]), (0, cols - a.shape[1])))


def prepare_params(online_enc, target_enc, pred, dp=LANE):
    def enc(e):
        return (_pad2d(e["w1"], dp, dp).astype(BF16),
                _pad2d(e["b1"], 1, dp).astype(jnp.float32),
                _pad2d(e["w2"], dp, dp).astype(BF16),
                _pad2d(e["b2"], 1, dp).astype(jnp.float32))

    online_p = enc(online_enc)
    target_p = enc(target_enc)
    pred_p = (_pad2d(pred["w1"], dp, dp).astype(BF16),
              _pad2d(pred["b1"], 1, dp).astype(jnp.float32),
              _pad2d(pred["w2"], dp, dp).astype(BF16),
              _pad2d(pred["b2"], 1, dp).astype(jnp.float32))
    alphas = jnp.concatenate([
        online_enc["a1"].reshape(1), online_enc["a2"].reshape(1),
        pred["a"].reshape(1),
        target_enc["a1"].reshape(1), target_enc["a2"].reshape(1),
        jnp.zeros((3,), jnp.float32),                # pad to 8 entries
    ]).astype(jnp.float32)
    return alphas, online_p, target_p, pred_p


def prepare_view(adj, x, dp=LANE):
    n = x.shape[0]
    return adj.astype(BF16), _pad2d(x, n, dp).astype(BF16)


# ----------------------------------------------------------------------------
# Jitted forward: exactly one fused pallas_call + output slicing.
# ----------------------------------------------------------------------------
@functools.partial(jax.jit, static_argnames=("d_emb",))
def bgrl_forward(o_adj, o_x, t_adj, t_x, alphas,
                 online_p, target_p, pred_p, *, d_emb):
    """BGRL.forward: returns (online_q, target_y)."""
    n, dp = o_x.shape
    o_w1, o_b1, o_w2, o_b2 = online_p
    t_w1, t_b1, t_w2, t_b2 = target_p
    p_w1, p_b1, p_w2, p_b2 = pred_p

    vspec = pl.BlockSpec(memory_space=pltpu.MemorySpace.VMEM)
    sspec = pl.BlockSpec(memory_space=pltpu.MemorySpace.SMEM)

    # Advisory scheduling hint for XLA.
    macs = 2 * (2 * n * n * dp + 2 * n * dp * dp) + 2 * n * dp * dp
    operands = (o_adj, o_x, t_adj, t_x, o_w1, o_b1, o_w2, o_b2,
                t_w1, t_b1, t_w2, t_b2, p_w1, p_b1, p_w2, p_b2)
    bytes_accessed = int(sum(a.size * a.dtype.itemsize for a in operands)
                         + 2 * n * dp * 2)

    q_pad, y_pad = pl.pallas_call(
        _bgrl_kernel,
        out_shape=(jax.ShapeDtypeStruct((n, dp), BF16),
                   jax.ShapeDtypeStruct((n, dp), BF16)),
        in_specs=[sspec] + [vspec] * 16,
        out_specs=(vspec, vspec),
        cost_estimate=pl.CostEstimate(flops=int(2 * macs), transcendentals=0,
                                      bytes_accessed=bytes_accessed),
    )(alphas, o_adj, o_x, t_adj, t_x,
      o_w1, o_b1, o_w2, o_b2, t_w1, t_b1, t_w2, t_b2,
      p_w1, p_b1, p_w2, p_b2)

    online_q = q_pad[:, :d_emb]
    # target branch is under torch.no_grad() + .detach() -> stop_gradient
    target_y = lax.stop_gradient(y_pad[:, :d_emb])
    return online_q, target_y


# ----------------------------------------------------------------------------
# Parameter / input construction (deterministic, in-script)
# ----------------------------------------------------------------------------
def _init_encoder(key, d_in, d_hid, d_out):
    k1, k2 = jax.random.split(key)
    return {
        "w1": jax.random.normal(k1, (d_in, d_hid), jnp.float32) * 0.1,
        "b1": jnp.zeros((1, d_hid), jnp.float32),
        "a1": jnp.full((1, 1), 0.25, jnp.float32),  # PReLU init slope
        "w2": jax.random.normal(k2, (d_hid, d_out), jnp.float32) * 0.1,
        "b2": jnp.zeros((1, d_out), jnp.float32),
        "a2": jnp.full((1, 1), 0.25, jnp.float32),
    }


def _init_predictor(key, d_in, d_hid, d_out):
    k1, k2 = jax.random.split(key)
    return {
        "w1": jax.random.normal(k1, (d_in, d_hid), jnp.float32) * 0.1,
        "b1": jnp.zeros((1, d_hid), jnp.float32),
        "a": jnp.full((1, 1), 0.25, jnp.float32),
        "w2": jax.random.normal(k2, (d_hid, d_out), jnp.float32) * 0.1,
        "b2": jnp.zeros((1, d_out), jnp.float32),
    }


def _make_graph(key, n_nodes, d_in, edge_prob=0.2):
    """Random graph -> (normalized adjacency A_hat, node features X), f32."""
    ka, kx = jax.random.split(key)
    a = (jax.random.uniform(ka, (n_nodes, n_nodes)) < edge_prob).astype(
        jnp.float32)
    a = jnp.maximum(a, a.T)                       # symmetrize
    eye = jnp.eye(n_nodes, dtype=jnp.float32)
    a = a * (1.0 - eye) + eye                     # A + I (diag exactly 1)
    deg = jnp.sum(a, axis=1)
    d_inv_sqrt = 1.0 / jnp.sqrt(deg)
    a_hat = a * d_inv_sqrt[:, None] * d_inv_sqrt[None, :]  # D^-1/2 A D^-1/2
    x = jax.random.normal(kx, (n_nodes, d_in), jnp.float32)
    return a_hat, x


# Pure-JAX f32 reference for validation of the bf16 kernel.
def _ref_encode(adj, x, p):
    h = adj @ (x @ p["w1"]) + p["b1"]
    h = jnp.where(h >= 0.0, h, p["a1"] * h)
    y = adj @ (h @ p["w2"]) + p["b2"]
    return jnp.where(y >= 0.0, y, p["a2"] * y)


def _ref_forward(online_adj, online_x, target_adj, target_x,
                 online_enc, target_enc, pred):
    y = _ref_encode(online_adj, online_x, online_enc)
    h = y @ pred["w1"] + pred["b1"]
    h = jnp.where(h >= 0.0, h, pred["a"] * h)
    q = h @ pred["w2"] + pred["b2"]
    ty = _ref_encode(target_adj, target_x, target_enc)
    return q, ty


if __name__ == "__main__":
    N = 128         # nodes (multiple of 128 -> adjacency is lane-dense)
    D_IN = 32       # input feature dim
    D_HID = 64      # encoder hidden dim
    D_EMB = 32      # embedding dim
    D_PRED = 64     # predictor hidden dim

    root = jax.random.PRNGKey(0)
    k_online_enc, k_target_enc, k_pred, k_g1, k_g2 = jax.random.split(root, 5)

    # target encoder = deep copy + reset_parameters -> different init seed
    online_enc = _init_encoder(k_online_enc, D_IN, D_HID, D_EMB)
    target_enc = _init_encoder(k_target_enc, D_IN, D_HID, D_EMB)
    pred = _init_predictor(k_pred, D_EMB, D_PRED, D_EMB)

    # two augmented "views" of the graph (online_x / target_x in torch code)
    online_adj, online_feats = _make_graph(k_g1, N, D_IN)
    target_adj, target_feats = _make_graph(k_g2, N, D_IN)

    # One-time preparation ("producer" side): bf16 cast + lane padding happen
    # exactly once, outside the jitted per-step forward.
    alphas, online_p, target_p, pred_p = prepare_params(
        online_enc, target_enc, pred, dp=LANE)
    o_adj_b, o_x_b = prepare_view(online_adj, online_feats, dp=LANE)
    t_adj_b, t_x_b = prepare_view(target_adj, target_feats, dp=LANE)

    online_q, target_y = bgrl_forward(o_adj_b, o_x_b, t_adj_b, t_x_b,
                                      alphas, online_p, target_p, pred_p,
                                      d_emb=D_EMB)
    jax.block_until_ready((online_q, target_y))

    assert online_q.shape == (N, D_EMB), online_q.shape
    assert target_y.shape == (N, D_EMB), target_y.shape
    assert jnp.all(jnp.isfinite(online_q.astype(jnp.float32)))
    assert jnp.all(jnp.isfinite(target_y.astype(jnp.float32)))

    # Validate against an f32 reference (relaxed tolerance for bf16 operands).
    ref_q, ref_ty = _ref_forward(online_adj, online_feats,
                                 target_adj, target_feats,
                                 online_enc, target_enc, pred)
    q_f32 = online_q.astype(jnp.float32)
    y_f32 = target_y.astype(jnp.float32)
    err_q = float(jnp.max(jnp.abs(q_f32 - ref_q))
                  / (jnp.max(jnp.abs(ref_q)) + 1e-6))
    err_y = float(jnp.max(jnp.abs(y_f32 - ref_ty))
                  / (jnp.max(jnp.abs(ref_ty)) + 1e-6))
    assert err_q < 0.1 and err_y < 0.1, (err_q, err_y)

    print("KERNEL_OK")
</pallas_src>

<mosaic_0001>
module attributes {stable_mosaic.version = 11 : i64} {
  func.func @_bgrl_kernel(%arg0: memref<8xf32, #tpu.memory_space<smem>>, %arg1: memref<128x128xbf16, #tpu.memory_space<vmem>>, %arg2: memref<128x128xbf16, #tpu.memory_space<vmem>>, %arg3: memref<128x128xbf16, #tpu.memory_space<vmem>>, %arg4: memref<128x128xbf16, #tpu.memory_space<vmem>>, %arg5: memref<128x128xbf16, #tpu.memory_space<vmem>>, %arg6: memref<1x128xf32, #tpu.memory_space<vmem>>, %arg7: memref<128x128xbf16, #tpu.memory_space<vmem>>, %arg8: memref<1x128xf32, #tpu.memory_space<vmem>>, %arg9: memref<128x128xbf16, #tpu.memory_space<vmem>>, %arg10: memref<1x128xf32, #tpu.memory_space<vmem>>, %arg11: memref<128x128xbf16, #tpu.memory_space<vmem>>, %arg12: memref<1x128xf32, #tpu.memory_space<vmem>>, %arg13: memref<128x128xbf16, #tpu.memory_space<vmem>>, %arg14: memref<1x128xf32, #tpu.memory_space<vmem>>, %arg15: memref<128x128xbf16, #tpu.memory_space<vmem>>, %arg16: memref<1x128xf32, #tpu.memory_space<vmem>>, %arg17: memref<128x128xbf16, #tpu.memory_space<vmem>>, %arg18: memref<128x128xbf16, #tpu.memory_space<vmem>>) attributes {dimension_semantics = [], scalar_prefetch = 0 : i64, scratch_operands = 0 : i64, tpu.core_type = #tpu.core_type<tc>} {
    %c0 = arith.constant 0 : index
    %0 = memref.load %arg0[%c0] : memref<8xf32, #tpu.memory_space<smem>>
    %c1 = arith.constant 1 : index
    %1 = memref.load %arg0[%c1] : memref<8xf32, #tpu.memory_space<smem>>
    %c0_0 = arith.constant 0 : index
    %c0_1 = arith.constant 0 : index
    %2 = vector.load %arg1[%c0_0, %c0_1] : memref<128x128xbf16, #tpu.memory_space<vmem>>, vector<128x128xbf16>
    %c0_2 = arith.constant 0 : index
    %c0_3 = arith.constant 0 : index
    %3 = vector.load %arg2[%c0_2, %c0_3] : memref<128x128xbf16, #tpu.memory_space<vmem>>, vector<128x128xbf16>
    %cst = arith.constant dense<0.000000e+00> : vector<128x128xf32>
    %4 = tpu.matmul %2, %3, %cst {dimension_numbers = #tpu.dot_dimension_numbers<[1], [0], [0], [1], [0, 0, 1, 1], [], []>} : vector<128x128xbf16>, vector<128x128xbf16>, vector<128x128xf32> -> vector<128x128xf32>
    %5 = arith.truncf %4 : vector<128x128xf32> to vector<128x128xbf16>
    %c0_4 = arith.constant 0 : index
    %c0_5 = arith.constant 0 : index
    %6 = vector.load %arg5[%c0_4, %c0_5] : memref<128x128xbf16, #tpu.memory_space<vmem>>, vector<128x128xbf16>
    %cst_6 = arith.constant dense<0.000000e+00> : vector<128x128xf32>
    %7 = tpu.matmul %5, %6, %cst_6 {dimension_numbers = #tpu.dot_dimension_numbers<[1], [0], [0], [1], [0, 0, 1, 1], [], []>} : vector<128x128xbf16>, vector<128x128xbf16>, vector<128x128xf32> -> vector<128x128xf32>
    %c0_7 = arith.constant 0 : index
    %c0_8 = arith.constant 0 : index
    %8 = vector.load %arg6[%c0_7, %c0_8] : memref<1x128xf32, #tpu.memory_space<vmem>>, vector<1x128xf32>
    %9 = vector.broadcast %8 : vector<1x128xf32> to vector<128x128xf32>
    %10 = arith.addf %7, %9 : vector<128x128xf32>
    %cst_9 = arith.constant 0.000000e+00 : f32
    %11 = vector.broadcast %cst_9 : f32 to vector<128x128xf32>
    %12 = arith.cmpf oge, %10, %11 : vector<128x128xf32>
    %13 = vector.broadcast %0 : f32 to vector<128x128xf32>
    %14 = arith.mulf %13, %10 : vector<128x128xf32>
    %15 = arith.select %12, %10, %14 : vector<128x128xi1>, vector<128x128xf32>
    %16 = arith.truncf %15 : vector<128x128xf32> to vector<128x128xbf16>
    %c0_10 = arith.constant 0 : index
    %c0_11 = arith.constant 0 : index
    %17 = vector.load %arg7[%c0_10, %c0_11] : memref<128x128xbf16, #tpu.memory_space<vmem>>, vector<128x128xbf16>
    %cst_12 = arith.constant dense<0.000000e+00> : vector<128x128xf32>
    %18 = tpu.matmul %16, %17, %cst_12 {dimension_numbers = #tpu.dot_dimension_numbers<[1], [0], [0], [1], [0, 0, 1, 1], [], []>} : vector<128x128xbf16>, vector<128x128xbf16>, vector<128x128xf32> -> vector<128x128xf32>
    %19 = arith.truncf %18 : vector<128x128xf32> to vector<128x128xbf16>
    %cst_13 = arith.constant dense<0.000000e+00> : vector<128x128xf32>
    %20 = tpu.matmul %2, %19, %cst_13 {dimension_numbers = #tpu.dot_dimension_numbers<[1], [0], [0], [1], [0, 0, 1, 1], [], []>} : vector<128x128xbf16>, vector<128x128xbf16>, vector<128x128xf32> -> vector<128x128xf32>
    %c0_14 = arith.constant 0 : index
    %c0_15 = arith.constant 0 : index
    %21 = vector.load %arg8[%c0_14, %c0_15] : memref<1x128xf32, #tpu.memory_space<vmem>>, vector<1x128xf32>
    %22 = vector.broadcast %21 : vector<1x128xf32> to vector<128x128xf32>
    %23 = arith.addf %20, %22 : vector<128x128xf32>
    %cst_16 = arith.constant 0.000000e+00 : f32
    %24 = vector.broadcast %cst_16 : f32 to vector<128x128xf32>
    %25 = arith.cmpf oge, %23, %24 : vector<128x128xf32>
    %26 = vector.broadcast %1 : f32 to vector<128x128xf32>
    %27 = arith.mulf %26, %23 : vector<128x128xf32>
    %28 = arith.select %25, %23, %27 : vector<128x128xi1>, vector<128x128xf32>
    %29 = arith.truncf %28 : vector<128x128xf32> to vector<128x128xbf16>
    %c0_17 = arith.constant 0 : index
    %c0_18 = arith.constant 0 : index
    %30 = vector.load %arg13[%c0_17, %c0_18] : memref<128x128xbf16, #tpu.memory_space<vmem>>, vector<128x128xbf16>
    %cst_19 = arith.constant dense<0.000000e+00> : vector<128x128xf32>
    %31 = tpu.matmul %29, %30, %cst_19 {dimension_numbers = #tpu.dot_dimension_numbers<[1], [0], [0], [1], [0, 0, 1, 1], [], []>} : vector<128x128xbf16>, vector<128x128xbf16>, vector<128x128xf32> -> vector<128x128xf32>
    %c0_20 = arith.constant 0 : index
    %c0_21 = arith.constant 0 : index
    %32 = vector.load %arg14[%c0_20, %c0_21] : memref<1x128xf32, #tpu.memory_space<vmem>>, vector<1x128xf32>
    %33 = vector.broadcast %32 : vector<1x128xf32> to vector<128x128xf32>
    %34 = arith.addf %31, %33 : vector<128x128xf32>
    %c2 = arith.constant 2 : index
    %35 = memref.load %arg0[%c2] : memref<8xf32, #tpu.memory_space<smem>>
    %cst_22 = arith.constant 0.000000e+00 : f32
    %36 = vector.broadcast %cst_22 : f32 to vector<128x128xf32>
    %37 = arith.cmpf oge, %34, %36 : vector<128x128xf32>
    %38 = vector.broadcast %35 : f32 to vector<128x128xf32>
    %39 = arith.mulf %38, %34 : vector<128x128xf32>
    %40 = arith.select %37, %34, %39 : vector<128x128xi1>, vector<128x128xf32>
    %41 = arith.truncf %40 : vector<128x128xf32> to vector<128x128xbf16>
    %c0_23 = arith.constant 0 : index
    %c0_24 = arith.constant 0 : index
    %42 = vector.load %arg15[%c0_23, %c0_24] : memref<128x128xbf16, #tpu.memory_space<vmem>>, vector<128x128xbf16>
    %cst_25 = arith.constant dense<0.000000e+00> : vector<128x128xf32>
    %43 = tpu.matmul %41, %42, %cst_25 {dimension_numbers = #tpu.dot_dimension_numbers<[1], [0], [0], [1], [0, 0, 1, 1], [], []>} : vector<128x128xbf16>, vector<128x128xbf16>, vector<128x128xf32> -> vector<128x128xf32>
    %c0_26 = arith.constant 0 : index
    %c0_27 = arith.constant 0 : index
    %44 = vector.load %arg16[%c0_26, %c0_27] : memref<1x128xf32, #tpu.memory_space<vmem>>, vector<1x128xf32>
    %45 = vector.broadcast %44 : vector<1x128xf32> to vector<128x128xf32>
    %46 = arith.addf %43, %45 : vector<128x128xf32>
    %47 = arith.truncf %46 : vector<128x128xf32> to vector<128x128xbf16>
    %c0_28 = arith.constant 0 : index
    %c0_29 = arith.constant 0 : index
    %48 = vector.load %arg17[%c0_28, %c0_29] : memref<128x128xbf16, #tpu.memory_space<vmem>>, vector<128x128xbf16>
    tpu.vector_store %arg17[%c0_28, %c0_29], %47 {strides = array<i32>} : memref<128x128xbf16, #tpu.memory_space<vmem>>, vector<128x128xbf16>,
    %c3 = arith.constant 3 : index
    %49 = memref.load %arg0[%c3] : memref<8xf32, #tpu.memory_space<smem>>
    %c4 = arith.constant 4 : index
    %50 = memref.load %arg0[%c4] : memref<8xf32, #tpu.memory_space<smem>>
    %c0_30 = arith.constant 0 : index
    %c0_31 = arith.constant 0 : index
    %51 = vector.load %arg3[%c0_30, %c0_31] : memref<128x128xbf16, #tpu.memory_space<vmem>>, vector<128x128xbf16>
    %c0_32 = arith.constant 0 : index
    %c0_33 = arith.constant 0 : index
    %52 = vector.load %arg4[%c0_32, %c0_33] : memref<128x128xbf16, #tpu.memory_space<vmem>>, vector<128x128xbf16>
    %cst_34 = arith.constant dense<0.000000e+00> : vector<128x128xf32>
    %53 = tpu.matmul %51, %52, %cst_34 {dimension_numbers = #tpu.dot_dimension_numbers<[1], [0], [0], [1], [0, 0, 1, 1], [], []>} : vector<128x128xbf16>, vector<128x128xbf16>, vector<128x128xf32> -> vector<128x128xf32>
    %54 = arith.truncf %53 : vector<128x128xf32> to vector<128x128xbf16>
    %c0_35 = arith.constant 0 : index
    %c0_36 = arith.constant 0 : index
    %55 = vector.load %arg9[%c0_35, %c0_36] : memref<128x128xbf16, #tpu.memory_space<vmem>>, vector<128x128xbf16>
    %cst_37 = arith.constant dense<0.000000e+00> : vector<128x128xf32>
    %56 = tpu.matmul %54, %55, %cst_37 {dimension_numbers = #tpu.dot_dimension_numbers<[1], [0], [0], [1], [0, 0, 1, 1], [], []>} : vector<128x128xbf16>, vector<128x128xbf16>, vector<128x128xf32> -> vector<128x128xf32>
    %c0_38 = arith.constant 0 : index
    %c0_39 = arith.constant 0 : index
    %57 = vector.load %arg10[%c0_38, %c0_39] : memref<1x128xf32, #tpu.memory_space<vmem>>, vector<1x128xf32>
    %58 = vector.broadcast %57 : vector<1x128xf32> to vector<128x128xf32>
    %59 = arith.addf %56, %58 : vector<128x128xf32>
    %cst_40 = arith.constant 0.000000e+00 : f32
    %60 = vector.broadcast %cst_40 : f32 to vector<128x128xf32>
    %61 = arith.cmpf oge, %59, %60 : vector<128x128xf32>
    %62 = vector.broadcast %49 : f32 to vector<128x128xf32>
    %63 = arith.mulf %62, %59 : vector<128x128xf32>
    %64 = arith.select %61, %59, %63 : vector<128x128xi1>, vector<128x128xf32>
    %65 = arith.truncf %64 : vector<128x128xf32> to vector<128x128xbf16>
    %c0_41 = arith.constant 0 : index
    %c0_42 = arith.constant 0 : index
    %66 = vector.load %arg11[%c0_41, %c0_42] : memref<128x128xbf16, #tpu.memory_space<vmem>>, vector<128x128xbf16>
    %cst_43 = arith.constant dense<0.000000e+00> : vector<128x128xf32>
    %67 = tpu.matmul %65, %66, %cst_43 {dimension_numbers = #tpu.dot_dimension_numbers<[1], [0], [0], [1], [0, 0, 1, 1], [], []>} : vector<128x128xbf16>, vector<128x128xbf16>, vector<128x128xf32> -> vector<128x128xf32>
    %68 = arith.truncf %67 : vector<128x128xf32> to vector<128x128xbf16>
    %cst_44 = arith.constant dense<0.000000e+00> : vector<128x128xf32>
    %69 = tpu.matmul %51, %68, %cst_44 {dimension_numbers = #tpu.dot_dimension_numbers<[1], [0], [0], [1], [0, 0, 1, 1], [], []>} : vector<128x128xbf16>, vector<128x128xbf16>, vector<128x128xf32> -> vector<128x128xf32>
    %c0_45 = arith.constant 0 : index
    %c0_46 = arith.constant 0 : index
    %70 = vector.load %arg12[%c0_45, %c0_46] : memref<1x128xf32, #tpu.memory_space<vmem>>, vector<1x128xf32>
    %71 = vector.broadcast %70 : vector<1x128xf32> to vector<128x128xf32>
    %72 = arith.addf %69, %71 : vector<128x128xf32>
    %cst_47 = arith.constant 0.000000e+00 : f32
    %73 = vector.broadcast %cst_47 : f32 to vector<128x128xf32>
    %74 = arith.cmpf oge, %72, %73 : vector<128x128xf32>
    %75 = vector.broadcast %50 : f32 to vector<128x128xf32>
    %76 = arith.mulf %75, %72 : vector<128x128xf32>
    %77 = arith.select %74, %72, %76 : vector<128x128xi1>, vector<128x128xf32>
    %78 = arith.truncf %77 : vector<128x128xf32> to vector<128x128xbf16>
    %c0_48 = arith.constant 0 : index
    %c0_49 = arith.constant 0 : index
    %79 = vector.load %arg18[%c0_48, %c0_49] : memref<128x128xbf16, #tpu.memory_space<vmem>>, vector<128x128xbf16>
    tpu.vector_store %arg18[%c0_48, %c0_49], %78 {strides = array<i32>} : memref<128x128xbf16, #tpu.memory_space<vmem>>, vector<128x128xbf16>,
    return
  }
}

</mosaic_0001>

<llo_original>
// kernel: bgrl_forward.1
$region0: #{bgrl_forward.1}
  #allocation0 [shape = 'u32[]', space=smem, size = 0x4, offset = 0x4, fixed_abs, tag = 'smem constant byte address 0x4 - core index']
  #allocation1 [shape = 'u32[72,128]{1,0:T(1,128)}', space=vmem, size = 0x9000, scoped, tag = 'internal scratch']
  %s0 = inlined_call_operand.vmem [shape: f32[8], index: 0, kind: input, shape index: {}]
  %s1 = inlined_call_operand.hbm [shape: bf16[128,128], index: 1, kind: input, shape index: {}]
  %s2 = inlined_call_operand.hbm [shape: bf16[128,128], index: 2, kind: input, shape index: {}]
  %s3 = inlined_call_operand.hbm [shape: bf16[128,128], index: 3, kind: input, shape index: {}]
  %s4 = inlined_call_operand.hbm [shape: bf16[128,128], index: 4, kind: input, shape index: {}]
  %s5 = inlined_call_operand.hbm [shape: bf16[128,128], index: 5, kind: input, shape index: {}]
  %s6 = inlined_call_operand.vmem [shape: f32[1,128], index: 6, kind: input, shape index: {}]
  %s7 = inlined_call_operand.hbm [shape: bf16[128,128], index: 7, kind: input, shape index: {}]
  %s8 = inlined_call_operand.vmem [shape: f32[1,128], index: 8, kind: input, shape index: {}]
  %s9 = inlined_call_operand.hbm [shape: bf16[128,128], index: 9, kind: input, shape index: {}]
  %s10 = inlined_call_operand.vmem [shape: f32[1,128], index: 10, kind: input, shape index: {}]
  %s11 = inlined_call_operand.hbm [shape: bf16[128,128], index: 11, kind: input, shape index: {}]
  %s12 = inlined_call_operand.vmem [shape: f32[1,128], index: 12, kind: input, shape index: {}]
  %s13 = inlined_call_operand.hbm [shape: bf16[128,128], index: 13, kind: input, shape index: {}]
  %s14 = inlined_call_operand.vmem [shape: f32[1,128], index: 14, kind: input, shape index: {}]
  %s15 = inlined_call_operand.hbm [shape: bf16[128,128], index: 15, kind: input, shape index: {}]
  %s16 = inlined_call_operand.vmem [shape: f32[1,128], index: 16, kind: input, shape index: {}]
  %s17 = inlined_call_operand.vmem [shape: bf16[128,128], index: 17, kind: output, shape index: {0}]
  %s18 = inlined_call_operand.vmem [shape: bf16[128,128], index: 18, kind: output, shape index: {1}]
  %19 = xla_tuple %s17, %s18
  %s20 = sld [smem:[#allocation0]]
  $region130: #{bgrl_forward.1} parent=0
    _
  %s22 = ssub.s32 1, %s20
  %s23 = scalar_select 0, %s22, %s20
  $region1: #{bgrl_forward.1} parent=0
    #allocation2 [shape = 'u8[512]{0}', space=smem, size = 0x200, scoped, tag = 'input window, operand 0, single buffered']
    #allocation3 [shape = 's32[1]{0}', space=sflag, size = 0x4, scoped, tag = 'scoped memory for bgrl_forward.1']
    #allocation4 [shape = 's32[1]{0}', space=sflag, size = 0x4, scoped, tag = 'scoped memory for bgrl_forward.1']
    #allocation5 [shape = 'u8[32768]{0}', space=vmem, size = 0x8000, scoped, tag = 'input window, operand 1, single buffered']
    #allocation6 [shape = 'u8[32768]{0}', space=vmem, size = 0x8000, scoped, tag = 'input window, operand 2, single buffered']
    #allocation7 [shape = 's32[1]{0}', space=sflag, size = 0x4, scoped, tag = 'scoped memory for bgrl_forward.1']
    #allocation8 [shape = 'u8[32768]{0}', space=vmem, size = 0x8000, scoped, tag = 'input window, operand 3, single buffered']
    #allocation9 [shape = 'u8[32768]{0}', space=vmem, size = 0x8000, scoped, tag = 'input window, operand 4, single buffered']
    #allocation10 [shape = 's32[1]{0}', space=sflag, size = 0x4, scoped, tag = 'scoped memory for bgrl_forward.1']
    #allocation11 [shape = 'u8[32768]{0}', space=vmem, size = 0x8000, scoped, tag = 'input window, operand 5, single buffered']
    #allocation12 [shape = 'u8[32768]{0}', space=vmem, size = 0x8000, scoped, tag = 'input window, operand 7, single buffered']
    #allocation13 [shape = 's32[1]{0}', space=sflag, size = 0x4, scoped, tag = 'scoped memory for bgrl_forward.1']
    #allocation14 [shape = 'u8[32768]{0}', space=vmem, size = 0x8000, scoped, tag = 'input window, operand 9, single buffered']
    #allocation15 [shape = 'u8[32768]{0}', space=vmem, size = 0x8000, scoped, tag = 'input window, operand 11, single buffered']
    #allocation16 [shape = 's32[1]{0}', space=sflag, size = 0x4, scoped, tag = 'scoped memory for bgrl_forward.1']
    #allocation17 [shape = 'u8[32768]{0}', space=vmem, size = 0x8000, scoped, tag = 'input window, operand 13, single buffered']
    #allocation18 [shape = 'u8[32768]{0}', space=vmem, size = 0x8000, scoped, tag = 'input window, operand 15, single buffered']
    #allocation19 [shape = 's32[1]{0}', space=sflag, size = 0x4, scoped, tag = 'scoped memory for bgrl_forward.1']
    %24 = vsyncpa [#allocation4], 0
    %25 = vsyncpa [#allocation3], 0
    %26 = vsyncpa [#allocation7], 0
    %27 = vsyncpa [#allocation10], 0
    %28 = vsyncpa [#allocation13], 0
    %29 = vsyncpa [#allocation16], 0
    %30 = vsyncpa [#allocation19], 0
    // Predicated region
    $region2: #{bgrl_forward.1} parent=1 // pred_check
      _
    $region3: #{bgrl_forward.1} parent=1 // pred_check_branch
      %32 = sbr.rel (0) target = $region5
    $region4: #{bgrl_forward.1} parent=1 // pred_region
      %34 = vsyncadd [#allocation4], 0
      %s36 = sshll.u32 %s0, 4
      %s37 = int_to_ptr.vmem [resolvable:$true] %s36
      %39 = dma.vmem_to_smem %s37, 16, [#allocation2], [#allocation4]
    $region5: #{bgrl_forward.1} parent=1 // pred_fallthru
      _
    // Predicated region
    $region6: #{bgrl_forward.1} parent=1 // pred_check
      _
    $region7: #{bgrl_forward.1} parent=1 // pred_check_branch
      %41 = sbr.rel (0) target = $region9
    $region8: #{bgrl_forward.1} parent=1 // pred_region
      %43 = vsyncadd [#allocation3], 0
      %s44 = sshll.u32 %s1, 4
      %s45 = int_to_ptr.hbm [resolvable:$true] %s44
      %s46 = sshll.u32 [#allocation5], 4
      %s47 = int_to_ptr.vmem [resolvable:$true] %s46
      %52 = dma.hbm_to_vmem [thread:$0]  %s45, 1024, %s47, [#allocation3], 64, 64, 4
    $region9: #{bgrl_forward.1} parent=1 // pred_fallthru
      _
    // Predicated region
    $region10: #{bgrl_forward.1} parent=1 // pred_check
      _
    $region11: #{bgrl_forward.1} parent=1 // pred_check_branch
      %54 = sbr.rel (0) target = $region13
    $region12: #{bgrl_forward.1} parent=1 // pred_region
      %56 = vsyncadd [#allocation7], 0
      %s57 = sshll.u32 %s2, 4
      %s58 = int_to_ptr.hbm [resolvable:$true] %s57
      %s59 = sshll.u32 [#allocation6], 4
      %s60 = int_to_ptr.vmem [resolvable:$true] %s59
      %65 = dma.hbm_to_vmem [thread:$0]  %s58, 1024, %s60, [#allocation7], 64, 64, 4
    $region13: #{bgrl_forward.1} parent=1 // pred_fallthru
      _
    // Predicated region
    $region14: #{bgrl_forward.1} parent=1 // pred_check
      _
    $region15: #{bgrl_forward.1} parent=1 // pred_check_branch
      %67 = sbr.rel (0) target = $region17
    $region16: #{bgrl_forward.1} parent=1 // pred_region
      %69 = vsyncadd [#allocation7], 0
      %s70 = sshll.u32 %s3, 4
      %s71 = int_to_ptr.hbm [resolvable:$true] %s70
      %s72 = sshll.u32 [#allocation8], 4
      %s73 = int_to_ptr.vmem [resolvable:$true] %s72
      %78 = dma.hbm_to_vmem [thread:$0]  %s71, 1024, %s73, [#allocation7], 64, 64, 4
    $region17: #{bgrl_forward.1} parent=1 // pred_fallthru
      _
    // Predicated region
    $region18: #{bgrl_forward.1} parent=1 // pred_check
      _
    $region19: #{bgrl_forward.1} parent=1 // pred_check_branch
      %80 = sbr.rel (0) target = $region21
    $region20: #{bgrl_forward.1} parent=1 // pred_region
      %82 = vsyncadd [#allocation10], 0
      %s83 = sshll.u32 %s4, 4
      %s84 = int_to_ptr.hbm [resolvable:$true] %s83
      %s85 = sshll.u32 [#allocation9], 4
      %s86 = int_to_ptr.vmem [resolvable:$true] %s85
      %91 = dma.hbm_to_vmem [thread:$0]  %s84, 1024, %s86, [#allocation10], 64, 64, 4
    $region21: #{bgrl_forward.1} parent=1 // pred_fallthru
      _
    // Predicated region
    $region22: #{bgrl_forward.1} parent=1 // pred_check
      _
    $region23: #{bgrl_forward.1} parent=1 // pred_check_branch
      %93 = sbr.rel (0) target = $region25
    $region24: #{bgrl_forward.1} parent=1 // pred_region
      %95 = vsyncadd [#allocation10], 0
      %s96 = sshll.u32 %s5, 4
      %s97 = int_to_ptr.hbm [resolvable:$true] %s96
      %s98 = sshll.u32 [#allocation11], 4
      %s99 = int_to_ptr.vmem [resolvable:$true] %s98
      %104 = dma.hbm_to_vmem [thread:$0]  %s97, 1024, %s99, [#allocation10], 64, 64, 4
    $region25: #{bgrl_forward.1} parent=1 // pred_fallthru
      _
    // Predicated region
    $region26: #{bgrl_forward.1} parent=1 // pred_check
      _
    $region27: #{bgrl_forward.1} parent=1 // pred_check_branch
      %106 = sbr.rel (0) target = $region29
    $region28: #{bgrl_forward.1} parent=1 // pred_region
      _
    $region29: #{bgrl_forward.1} parent=1 // pred_fallthru
      _
    // Predicated region
    $region30: #{bgrl_forward.1} parent=1 // pred_check
      _
    $region31: #{bgrl_forward.1} parent=1 // pred_check_branch
      %108 = sbr.rel (0) target = $region33
    $region32: #{bgrl_forward.1} parent=1 // pred_region
      %110 = vsyncadd [#allocation13], 0
      %s111 = sshll.u32 %s7, 4
      %s112 = int_to_ptr.hbm [resolvable:$true] %s111
      %s113 = sshll.u32 [#allocation12], 4
      %s114 = int_to_ptr.vmem [resolvable:$true] %s113
      %119 = dma.hbm_to_vmem [thread:$0]  %s112, 1024, %s114, [#allocation13], 64, 64, 4
    $region33: #{bgrl_forward.1} parent=1 // pred_fallthru
      _
    // Predicated region
    $region34: #{bgrl_forward.1} parent=1 // pred_check
      _
    $region35: #{bgrl_forward.1} parent=1 // pred_check_branch
      %121 = sbr.rel (0) target = $region37
    $region36: #{bgrl_forward.1} parent=1 // pred_region
      _
    $region37: #{bgrl_forward.1} parent=1 // pred_fallthru
      _
    // Predicated region
    $region38: #{bgrl_forward.1} parent=1 // pred_check
      _
    $region39: #{bgrl_forward.1} parent=1 // pred_check_branch
      %123 = sbr.rel (0) target = $region41
    $region40: #{bgrl_forward.1} parent=1 // pred_region
      %125 = vsyncadd [#allocation13], 0
      %s126 = sshll.u32 %s9, 4
      %s127 = int_to_ptr.hbm [resolvable:$true] %s126
      %s128 = sshll.u32 [#allocation14], 4
      %s129 = int_to_ptr.vmem [resolvable:$true] %s128
      %134 = dma.hbm_to_vmem [thread:$0]  %s127, 1024, %s129, [#allocation13], 64, 64, 4
    $region41: #{bgrl_forward.1} parent=1 // pred_fallthru
      _
    // Predicated region
    $region42: #{bgrl_forward.1} parent=1 // pred_check
      _
    $region43: #{bgrl_forward.1} parent=1 // pred_check_branch
      %136 = sbr.rel (0) target = $region45
    $region44: #{bgrl_forward.1} parent=1 // pred_region
      _
    $region45: #{bgrl_forward.1} parent=1 // pred_fallthru
      _
    // Predicated region
    $region46: #{bgrl_forward.1} parent=1 // pred_check
      _
    $region47: #{bgrl_forward.1} parent=1 // pred_check_branch
      %138 = sbr.rel (0) target = $region49
    $region48: #{bgrl_forward.1} parent=1 // pred_region
      %140 = vsyncadd [#allocation16], 0
      %s141 = sshll.u32 %s11, 4
      %s142 = int_to_ptr.hbm [resolvable:$true] %s141
      %s143 = sshll.u32 [#allocation15], 4
      %s144 = int_to_ptr.vmem [resolvable:$true] %s143
      %149 = dma.hbm_to_vmem [thread:$0]  %s142, 1024, %s144, [#allocation16], 64, 64, 4
    $region49: #{bgrl_forward.1} parent=1 // pred_fallthru
      _
    // Predicated region
    $region50: #{bgrl_forward.1} parent=1 // pred_check
      _
    $region51: #{bgrl_forward.1} parent=1 // pred_check_branch
      %151 = sbr.rel (0) target = $region53
    $region52: #{bgrl_forward.1} parent=1 // pred_region
      _
    $region53: #{bgrl_forward.1} parent=1 // pred_fallthru
      _
    // Predicated region
    $region54: #{bgrl_forward.1} parent=1 // pred_check
      _
    $region55: #{bgrl_forward.1} parent=1 // pred_check_branch
      %153 = sbr.rel (0) target = $region57
    $region56: #{bgrl_forward.1} parent=1 // pred_region
      %155 = vsyncadd [#allocation16], 0
      %s156 = sshll.u32 %s13, 4
      %s157 = int_to_ptr.hbm [resolvable:$true] %s156
      %s158 = sshll.u32 [#allocation17], 4
      %s159 = int_to_ptr.vmem [resolvable:$true] %s158
      %164 = dma.hbm_to_vmem [thread:$0]  %s157, 1024, %s159, [#allocation16], 64, 64, 4
    $region57: #{bgrl_forward.1} parent=1 // pred_fallthru
      _
    // Predicated region
    $region58: #{bgrl_forward.1} parent=1 // pred_check
      _
    $region59: #{bgrl_forward.1} parent=1 // pred_check_branch
      %166 = sbr.rel (0) target = $region61
    $region60: #{bgrl_forward.1} parent=1 // pred_region
      _
    $region61: #{bgrl_forward.1} parent=1 // pred_fallthru
      _
    // Predicated region
    $region62: #{bgrl_forward.1} parent=1 // pred_check
      _
    $region63: #{bgrl_forward.1} parent=1 // pred_check_branch
      %168 = sbr.rel (0) target = $region65
    $region64: #{bgrl_forward.1} parent=1 // pred_region
      %170 = vsyncadd [#allocation19], 0
      %s171 = sshll.u32 %s15, 4
      %s172 = int_to_ptr.hbm [resolvable:$true] %s171
      %s173 = sshll.u32 [#allocation18], 4
      %s174 = int_to_ptr.vmem [resolvable:$true] %s173
      %179 = dma.hbm_to_vmem [thread:$0]  %s172, 1024, %s174, [#allocation19], 64, 64, 4
    $region65: #{bgrl_forward.1} parent=1 // pred_fallthru
      _
    // Predicated region
    $region66: #{bgrl_forward.1} parent=1 // pred_check
      _
    $region67: #{bgrl_forward.1} parent=1 // pred_check_branch
      %181 = sbr.rel (0) target = $region69
    $region68: #{bgrl_forward.1} parent=1 // pred_region
      _
    $region69: #{bgrl_forward.1} parent=1 // pred_fallthru
      _
    // Predicated region
    $region70: #{bgrl_forward.1} parent=1 // pred_check
      _
    $region71: #{bgrl_forward.1} parent=1 // pred_check_branch
      %183 = sbr.rel (0) target = $region73
    $region72: #{bgrl_forward.1} parent=1 // pred_region
      %185 = dma.done [#allocation4], 16
    $region73: #{bgrl_forward.1} parent=1 // pred_fallthru
      _
    // Predicated region
    $region74: #{bgrl_forward.1} parent=1 // pred_check
      _
    $region75: #{bgrl_forward.1} parent=1 // pred_check_branch
      %187 = sbr.rel (0) target = $region77
    $region76: #{bgrl_forward.1} parent=1 // pred_region
      %189 = dma.done [#allocation3], 1024
    $region77: #{bgrl_forward.1} parent=1 // pred_fallthru
      _
    // Predicated region
    $region78: #{bgrl_forward.1} parent=1 // pred_check
      _
    $region79: #{bgrl_forward.1} parent=1 // pred_check_branch
      %191 = sbr.rel (0) target = $region81
    $region80: #{bgrl_forward.1} parent=1 // pred_region
      %193 = dma.done [#allocation7], 1024
    $region81: #{bgrl_forward.1} parent=1 // pred_fallthru
      _
    // Predicated region
    $region82: #{bgrl_forward.1} parent=1 // pred_check
      _
    $region83: #{bgrl_forward.1} parent=1 // pred_check_branch
      %195 = sbr.rel (0) target = $region85
    $region84: #{bgrl_forward.1} parent=1 // pred_region
      %197 = dma.done [#allocation7], 1024
    $region85: #{bgrl_forward.1} parent=1 // pred_fallthru
      _
    // Predicated region
    $region86: #{bgrl_forward.1} parent=1 // pred_check
      _
    $region87: #{bgrl_forward.1} parent=1 // pred_check_branch
      %199 = sbr.rel (0) target = $region89
    $region88: #{bgrl_forward.1} parent=1 // pred_region
      %201 = dma.done [#allocation10], 1024
    $region89: #{bgrl_forward.1} parent=1 // pred_fallthru
      _
    // Predicated region
    $region90: #{bgrl_forward.1} parent=1 // pred_check
      _
    $region91: #{bgrl_forward.1} parent=1 // pred_check_branch
      %203 = sbr.rel (0) target = $region93
    $region92: #{bgrl_forward.1} parent=1 // pred_region
      %205 = dma.done [#allocation10], 1024
    $region93: #{bgrl_forward.1} parent=1 // pred_fallthru
      _
    // Predicated region
    $region94: #{bgrl_forward.1} parent=1 // pred_check
      _
    $region95: #{bgrl_forward.1} parent=1 // pred_check_branch
      %207 = sbr.rel (0) target = $region97
    $region96: #{bgrl_forward.1} parent=1 // pred_region
      %209 = dma.done [#allocation13], 1024
    $region97: #{bgrl_forward.1} parent=1 // pred_fallthru
      _
    // Predicated region
    $region98: #{bgrl_forward.1} parent=1 // pred_check
      _
    $region99: #{bgrl_forward.1} parent=1 // pred_check_branch
      %211 = sbr.rel (0) target = $region101
    $region100: #{bgrl_forward.1} parent=1 // pred_region
      %213 = dma.done [#allocation13], 1024
    $region101: #{bgrl_forward.1} parent=1 // pred_fallthru
      _
    // Predicated region
    $region102: #{bgrl_forward.1} parent=1 // pred_check
      _
    $region103: #{bgrl_forward.1} parent=1 // pred_check_branch
      %215 = sbr.rel (0) target = $region105
    $region104: #{bgrl_forward.1} parent=1 // pred_region
      %217 = dma.done [#allocation16], 1024
    $region105: #{bgrl_forward.1} parent=1 // pred_fallthru
      _
    // Predicated region
    $region106: #{bgrl_forward.1} parent=1 // pred_check
      _
    $region107: #{bgrl_forward.1} parent=1 // pred_check_branch
      %219 = sbr.rel (0) target = $region109
    $region108: #{bgrl_forward.1} parent=1 // pred_region
      %221 = dma.done [#allocation16], 1024
    $region109: #{bgrl_forward.1} parent=1 // pred_fallthru
      _
    // Predicated region
    $region110: #{bgrl_forward.1} parent=1 // pred_check
      _
    $region111: #{bgrl_forward.1} parent=1 // pred_check_branch
      %223 = sbr.rel (0) target = $region113
    $region112: #{bgrl_forward.1} parent=1 // pred_region
      %225 = dma.done [#allocation19], 1024
    $region113: #{bgrl_forward.1} parent=1 // pred_fallthru
      _
    %226 = sfence
    %s227 = sld [smem:[#allocation2]]
    %s228 = sld [smem:[#allocation2 + $0x1]]
    %v229 = vld [vmem:[#allocation5] sm:$0xf]
    %v230 = vld [vmem:[#allocation5 + $0x4] sm:$0xf]
    %v231 = vld [vmem:[#allocation5 + $0x8] sm:$0xf]
    %v232 = vld [vmem:[#allocation5 + $0xc] sm:$0xf]
    %v233 = vld [vmem:[#allocation5 + $0x10] sm:$0xf]
    %v234 = vld [vmem:[#allocation5 + $0x14] sm:$0xf]
    %v235 = vld [vmem:[#allocation5 + $0x18] sm:$0xf]
    %v236 = vld [vmem:[#allocation5 + $0x1c] sm:$0xf]
    %v237 = vld [vmem:[#allocation5 + $0x20] sm:$0xf]
    %v238 = vld [vmem:[#allocation5 + $0x24] sm:$0xf]
    %v239 = vld [vmem:[#allocation5 + $0x28] sm:$0xf]
    %v240 = vld [vmem:[#allocation5 + $0x2c] sm:$0xf]
    %v241 = vld [vmem:[#allocation5 + $0x30] sm:$0xf]
    %v242 = vld [vmem:[#allocation5 + $0x34] sm:$0xf]
    %v243 = vld [vmem:[#allocation5 + $0x38] sm:$0xf]
    %v244 = vld [vmem:[#allocation5 + $0x3c] sm:$0xf]
    %v245 = vld [vmem:[#allocation6] sm:$0xf]
    %v246 = vld [vmem:[#allocation6 + $0x4] sm:$0xf]
    %v247 = vld [vmem:[#allocation6 + $0x8] sm:$0xf]
    %v248 = vld [vmem:[#allocation6 + $0xc] sm:$0xf]
    %v249 = vld [vmem:[#allocation6 + $0x10] sm:$0xf]
    %v250 = vld [vmem:[#allocation6 + $0x14] sm:$0xf]
    %v251 = vld [vmem:[#allocation6 + $0x18] sm:$0xf]
    %v252 = vld [vmem:[#allocation6 + $0x1c] sm:$0xf]
    %v253 = vld [vmem:[#allocation6 + $0x20] sm:$0xf]
    %v254 = vld [vmem:[#allocation6 + $0x24] sm:$0xf]
    %v255 = vld [vmem:[#allocation6 + $0x28] sm:$0xf]
    %v256 = vld [vmem:[#allocation6 + $0x2c] sm:$0xf]
    %v257 = vld [vmem:[#allocation6 + $0x30] sm:$0xf]
    %v258 = vld [vmem:[#allocation6 + $0x34] sm:$0xf]
    %v259 = vld [vmem:[#allocation6 + $0x38] sm:$0xf]
    %v260 = vld [vmem:[#allocation6 + $0x3c] sm:$0xf]
    %v277 = vunpack.c.l.b16 %v229
    %v278 = vunpack.c.l.b16 %v230
    %v279 = vunpack.c.l.b16 %v231
    %v280 = vunpack.c.l.b16 %v232
    %v281 = vunpack.c.l.b16 %v233
    %v282 = vunpack.c.l.b16 %v234
    %v283 = vunpack.c.l.b16 %v235
    %v284 = vunpack.c.l.b16 %v236
    %v285 = vunpack.c.l.b16 %v237
    %v286 = vunpack.c.l.b16 %v238
    %v287 = vunpack.c.l.b16 %v239
    %v288 = vunpack.c.l.b16 %v240
    %v289 = vunpack.c.l.b16 %v241
    %v290 = vunpack.c.l.b16 %v242
    %v291 = vunpack.c.l.b16 %v243
    %v292 = vunpack.c.l.b16 %v244
    %v293 = vpack.c.b16 %v278, %v277
    %v294 = vpack.c.b16 %v280, %v279
    %v295 = vpack.c.b16 %v282, %v281
    %v296 = vpack.c.b16 %v284, %v283
    %v297 = vpack.c.b16 %v286, %v285
    %v298 = vpack.c.b16 %v288, %v287
    %v299 = vpack.c.b16 %v290, %v289
    %v300 = vpack.c.b16 %v292, %v291
    %v325 = vunpack.c.l.b16 %v245
    %v326 = vunpack.c.l.b16 %v246
    %v327 = vunpack.c.l.b16 %v247
    %v328 = vunpack.c.l.b16 %v248
    %v329 = vunpack.c.l.b16 %v249
    %v330 = vunpack.c.l.b16 %v250
    %v331 = vunpack.c.l.b16 %v251
    %v332 = vunpack.c.l.b16 %v252
    %v333 = vunpack.c.l.b16 %v253
    %v334 = vunpack.c.l.b16 %v254
    %v335 = vunpack.c.l.b16 %v255
    %v336 = vunpack.c.l.b16 %v256
    %v337 = vunpack.c.l.b16 %v257
    %v338 = vunpack.c.l.b16 %v258
    %v339 = vunpack.c.l.b16 %v259
    %v340 = vunpack.c.l.b16 %v260
    %v341 = vpack.c.b16 %v326, %v325
    %v342 = vpack.c.b16 %v328, %v327
    %v343 = vpack.c.b16 %v330, %v329
    %v344 = vpack.c.b16 %v332, %v331
    %v345 = vpack.c.b16 %v334, %v333
    %v346 = vpack.c.b16 %v336, %v335
    %v347 = vpack.c.b16 %v338, %v337
    %v348 = vpack.c.b16 %v340, %v339
    %357 = vmatpush.bf16.msra.mxu0 %v348
    %358 = vmatpush.bf16.msra.mxu0 %v347
    %359 = vmatpush.bf16.msra.mxu0 %v346
    %360 = vmatpush.bf16.msra.mxu0 %v345
    %361 = vmatpush.bf16.msra.mxu0 %v344
    %362 = vmatpush.bf16.msra.mxu0 %v343
    %363 = vmatpush.bf16.msra.mxu0 %v342
    %364 = vmatpush.bf16.msra.mxu0 %v341
    %365 = vmatmul.bf16.gmra.mxu0 %v293
    %v366 = vpop.f32.mrf.mxu0
    %v367 = vadd.f32 0.0, %v366
    %v368 = vpop.f32.mrf.mxu0
    %v369 = vadd.f32 0.0, %v368
    %370 = vmatmul.bf16.gmra.mxu0 %v294
    %v371 = vpop.f32.mrf.mxu0
    %v372 = vadd.f32 0.0, %v371
    %v373 = vpop.f32.mrf.mxu0
    %v374 = vadd.f32 0.0, %v373
    %375 = vmatmul.bf16.gmra.mxu0 %v295
    %v376 = vpop.f32.mrf.mxu0
    %v377 = vadd.f32 0.0, %v376
    %v378 = vpop.f32.mrf.mxu0
    %v379 = vadd.f32 0.0, %v378
    %380 = vmatmul.bf16.gmra.mxu0 %v296
    %v381 = vpop.f32.mrf.mxu0
    %v382 = vadd.f32 0.0, %v381
    %v383 = vpop.f32.mrf.mxu0
    %v384 = vadd.f32 0.0, %v383
    %385 = vmatmul.bf16.gmra.mxu0 %v297
    %v386 = vpop.f32.mrf.mxu0
    %v387 = vadd.f32 0.0, %v386
    %v388 = vpop.f32.mrf.mxu0
    %v389 = vadd.f32 0.0, %v388
    %390 = vmatmul.bf16.gmra.mxu0 %v298
    %v391 = vpop.f32.mrf.mxu0
    %v392 = vadd.f32 0.0, %v391
    %v393 = vpop.f32.mrf.mxu0
    %v394 = vadd.f32 0.0, %v393
    %395 = vmatmul.bf16.gmra.mxu0 %v299
    %v396 = vpop.f32.mrf.mxu0
    %v397 = vadd.f32 0.0, %v396
    %v398 = vpop.f32.mrf.mxu0
    %v399 = vadd.f32 0.0, %v398
    %400 = vmatmul.bf16.gmra.mxu0 %v300
    %v401 = vpop.f32.mrf.mxu0
    %v402 = vadd.f32 0.0, %v401
    %v403 = vpop.f32.mrf.mxu0
    %v404 = vadd.f32 0.0, %v403
    %405 = vdwg.mxu0
    %v406 = vpack.c.bf16 %v369, %v367
    %v407 = vpack.c.bf16 %v374, %v372
    %v408 = vpack.c.bf16 %v379, %v377
    %v409 = vpack.c.bf16 %v384, %v382
    %v410 = vpack.c.bf16 %v389, %v387
    %v411 = vpack.c.bf16 %v394, %v392
    %v412 = vpack.c.bf16 %v399, %v397
    %v413 = vpack.c.bf16 %v404, %v402
    %v414 = vld [vmem:[#allocation11] sm:$0xf]
    %v415 = vld [vmem:[#allocation11 + $0x4] sm:$0xf]
    %v416 = vld [vmem:[#allocation11 + $0x8] sm:$0xf]
    %v417 = vld [vmem:[#allocation11 + $0xc] sm:$0xf]
    %v418 = vld [vmem:[#allocation11 + $0x10] sm:$0xf]
    %v419 = vld [vmem:[#allocation11 + $0x14] sm:$0xf]
    %v420 = vld [vmem:[#allocation11 + $0x18] sm:$0xf]
    %v421 = vld [vmem:[#allocation11 + $0x1c] sm:$0xf]
    %v422 = vld [vmem:[#allocation11 + $0x20] sm:$0xf]
    %v423 = vld [vmem:[#allocation11 + $0x24] sm:$0xf]
    %v424 = vld [vmem:[#allocation11 + $0x28] sm:$0xf]
    %v425 = vld [vmem:[#allocation11 + $0x2c] sm:$0xf]
    %v426 = vld [vmem:[#allocation11 + $0x30] sm:$0xf]
    %v427 = vld [vmem:[#allocation11 + $0x34] sm:$0xf]
    %v428 = vld [vmem:[#allocation11 + $0x38] sm:$0xf]
    %v429 = vld [vmem:[#allocation11 + $0x3c] sm:$0xf]
    %v430 = vld [vmem:[%s6] sm:$0x1]
    %v432 = vperm.slane %v430, 0
    %v450 = vunpack.c.l.b16 %v414
    %v451 = vunpack.c.l.b16 %v415
    %v452 = vunpack.c.l.b16 %v416
    %v453 = vunpack.c.l.b16 %v417
    %v454 = vunpack.c.l.b16 %v418
    %v455 = vunpack.c.l.b16 %v419
    %v456 = vunpack.c.l.b16 %v420
    %v457 = vunpack.c.l.b16 %v421
    %v458 = vunpack.c.l.b16 %v422
    %v459 = vunpack.c.l.b16 %v423
    %v460 = vunpack.c.l.b16 %v424
    %v461 = vunpack.c.l.b16 %v425
    %v462 = vunpack.c.l.b16 %v426
    %v463 = vunpack.c.l.b16 %v427
    %v464 = vunpack.c.l.b16 %v428
    %v465 = vunpack.c.l.b16 %v429
    %v466 = vpack.c.b16 %v451, %v450
    %v467 = vpack.c.b16 %v453, %v452
    %v468 = vpack.c.b16 %v455, %v454
    %v469 = vpack.c.b16 %v457, %v456
    %v470 = vpack.c.b16 %v459, %v458
    %v471 = vpack.c.b16 %v461, %v460
    %v472 = vpack.c.b16 %v463, %v462
    %v473 = vpack.c.b16 %v465, %v464
    %482 = vmatpush.bf16.msra.mxu0 %v473
    %483 = vmatpush.bf16.msra.mxu0 %v472
    %484 = vmatpush.bf16.msra.mxu0 %v471
    %485 = vmatpush.bf16.msra.mxu0 %v470
    %486 = vmatpush.bf16.msra.mxu0 %v469
    %487 = vmatpush.bf16.msra.mxu0 %v468
    %488 = vmatpush.bf16.msra.mxu0 %v467
    %489 = vmatpush.bf16.msra.mxu0 %v466
    %490 = vmatmul.bf16.gmra.mxu0 %v406
    %v491 = vpop.f32.mrf.mxu0
    %v492 = vadd.f32 %v432, %v491
    %v493 = vpop.f32.mrf.mxu0
    %v494 = vadd.f32 %v432, %v493
    %495 = vmatmul.bf16.gmra.mxu0 %v407
    %v496 = vpop.f32.mrf.mxu0
    %v497 = vadd.f32 %v432, %v496
    %v498 = vpop.f32.mrf.mxu0
    %v499 = vadd.f32 %v432, %v498
    %500 = vmatmul.bf16.gmra.mxu0 %v408
    %v501 = vpop.f32.mrf.mxu0
    %v502 = vadd.f32 %v432, %v501
    %v503 = vpop.f32.mrf.mxu0
    %v504 = vadd.f32 %v432, %v503
    %505 = vmatmul.bf16.gmra.mxu0 %v409
    %v506 = vpop.f32.mrf.mxu0
    %v507 = vadd.f32 %v432, %v506
    %v508 = vpop.f32.mrf.mxu0
    %v509 = vadd.f32 %v432, %v508
    %510 = vmatmul.bf16.gmra.mxu0 %v410
    %v511 = vpop.f32.mrf.mxu0
    %v512 = vadd.f32 %v432, %v511
    %v513 = vpop.f32.mrf.mxu0
    %v514 = vadd.f32 %v432, %v513
    %515 = vmatmul.bf16.gmra.mxu0 %v411
    %v516 = vpop.f32.mrf.mxu0
    %v517 = vadd.f32 %v432, %v516
    %v518 = vpop.f32.mrf.mxu0
    %v519 = vadd.f32 %v432, %v518
    %520 = vmatmul.bf16.gmra.mxu0 %v412
    %v521 = vpop.f32.mrf.mxu0
    %v522 = vadd.f32 %v432, %v521
    %v523 = vpop.f32.mrf.mxu0
    %v524 = vadd.f32 %v432, %v523
    %525 = vmatmul.bf16.gmra.mxu0 %v413
    %v526 = vpop.f32.mrf.mxu0
    %v527 = vadd.f32 %v432, %v526
    %v528 = vpop.f32.mrf.mxu0
    %v529 = vadd.f32 %v432, %v528
    %530 = vdwg.mxu0
    %vm531 = vcmp.ge.f32.partialorder %v492, 0.0
    %vm532 = vcmp.ge.f32.partialorder %v494, 0.0
    %vm533 = vcmp.ge.f32.partialorder %v497, 0.0
    %vm534 = vcmp.ge.f32.partialorder %v499, 0.0
    %vm535 = vcmp.ge.f32.partialorder %v502, 0.0
    %vm536 = vcmp.ge.f32.partialorder %v504, 0.0
    %vm537 = vcmp.ge.f32.partialorder %v507, 0.0
    %vm538 = vcmp.ge.f32.partialorder %v509, 0.0
    %vm539 = vcmp.ge.f32.partialorder %v512, 0.0
    %vm540 = vcmp.ge.f32.partialorder %v514, 0.0
    %vm541 = vcmp.ge.f32.partialorder %v517, 0.0
    %vm542 = vcmp.ge.f32.partialorder %v519, 0.0
    %vm543 = vcmp.ge.f32.partialorder %v522, 0.0
    %vm544 = vcmp.ge.f32.partialorder %v524, 0.0
    %vm545 = vcmp.ge.f32.partialorder %v527, 0.0
    %vm546 = vcmp.ge.f32.partialorder %v529, 0.0
    %v547 = vstv %s227
    %v548 = vmul.f32 %v547, %v492
    %v549 = vmul.f32 %v547, %v494
    %v550 = vmul.f32 %v547, %v497
    %v551 = vmul.f32 %v547, %v499
    %v552 = vmul.f32 %v547, %v502
    %v553 = vmul.f32 %v547, %v504
    %v554 = vmul.f32 %v547, %v507
    %v555 = vmul.f32 %v547, %v509
    %v556 = vmul.f32 %v547, %v512
    %v557 = vmul.f32 %v547, %v514
    %v558 = vmul.f32 %v547, %v517
    %v559 = vmul.f32 %v547, %v519
    %v560 = vmul.f32 %v547, %v522
    %v561 = vmul.f32 %v547, %v524
    %v562 = vmul.f32 %v547, %v527
    %v563 = vmul.f32 %v547, %v529
    %v564 = vsel %vm531, %v492, %v548
    %v565 = vsel %vm532, %v494, %v549
    %v566 = vsel %vm533, %v497, %v550
    %v567 = vsel %vm534, %v499, %v551
    %v568 = vsel %vm535, %v502, %v552
    %v569 = vsel %vm536, %v504, %v553
    %v570 = vsel %vm537, %v507, %v554
    %v571 = vsel %vm538, %v509, %v555
    %v572 = vsel %vm539, %v512, %v556
    %v573 = vsel %vm540, %v514, %v557
    %v574 = vsel %vm541, %v517, %v558
    %v575 = vsel %vm542, %v519, %v559
    %v576 = vsel %vm543, %v522, %v560
    %v577 = vsel %vm544, %v524, %v561
    %v578 = vsel %vm545, %v527, %v562
    %v579 = vsel %vm546, %v529, %v563
    %v580 = vpack.c.bf16 %v565, %v564
    %v581 = vpack.c.bf16 %v567, %v566
    %v582 = vpack.c.bf16 %v569, %v568
    %v583 = vpack.c.bf16 %v571, %v570
    %v584 = vpack.c.bf16 %v573, %v572
    %v585 = vpack.c.bf16 %v575, %v574
    %v586 = vpack.c.bf16 %v577, %v576
    %v587 = vpack.c.bf16 %v579, %v578
    %v588 = vld [vmem:[#allocation12] sm:$0xf]
    %v589 = vld [vmem:[#allocation12 + $0x4] sm:$0xf]
    %v590 = vld [vmem:[#allocation12 + $0x8] sm:$0xf]
    %v591 = vld [vmem:[#allocation12 + $0xc] sm:$0xf]
    %v592 = vld [vmem:[#allocation12 + $0x10] sm:$0xf]
    %v593 = vld [vmem:[#allocation12 + $0x14] sm:$0xf]
    %v594 = vld [vmem:[#allocation12 + $0x18] sm:$0xf]
    %v595 = vld [vmem:[#allocation12 + $0x1c] sm:$0xf]
    %v596 = vld [vmem:[#allocation12 + $0x20] sm:$0xf]
    %v597 = vld [vmem:[#allocation12 + $0x24] sm:$0xf]
    %v598 = vld [vmem:[#allocation12 + $0x28] sm:$0xf]
    %v599 = vld [vmem:[#allocation12 + $0x2c] sm:$0xf]
    %v600 = vld [vmem:[#allocation12 + $0x30] sm:$0xf]
    %v601 = vld [vmem:[#allocation12 + $0x34] sm:$0xf]
    %v602 = vld [vmem:[#allocation12 + $0x38] sm:$0xf]
    %v603 = vld [vmem:[#allocation12 + $0x3c] sm:$0xf]
    %v620 = vunpack.c.l.b16 %v588
    %v621 = vunpack.c.l.b16 %v589
    %v622 = vunpack.c.l.b16 %v590
    %v623 = vunpack.c.l.b16 %v591
    %v624 = vunpack.c.l.b16 %v592
    %v625 = vunpack.c.l.b16 %v593
    %v626 = vunpack.c.l.b16 %v594
    %v627 = vunpack.c.l.b16 %v595
    %v628 = vunpack.c.l.b16 %v596
    %v629 = vunpack.c.l.b16 %v597
    %v630 = vunpack.c.l.b16 %v598
    %v631 = vunpack.c.l.b16 %v599
    %v632 = vunpack.c.l.b16 %v600
    %v633 = vunpack.c.l.b16 %v601
    %v634 = vunpack.c.l.b16 %v602
    %v635 = vunpack.c.l.b16 %v603
    %v636 = vpack.c.b16 %v621, %v620
    %v637 = vpack.c.b16 %v623, %v622
    %v638 = vpack.c.b16 %v625, %v624
    %v639 = vpack.c.b16 %v627, %v626
    %v640 = vpack.c.b16 %v629, %v628
    %v641 = vpack.c.b16 %v631, %v630
    %v642 = vpack.c.b16 %v633, %v632
    %v643 = vpack.c.b16 %v635, %v634
    %652 = vmatpush.bf16.msra.mxu0 %v643
    %653 = vmatpush.bf16.msra.mxu0 %v642
    %654 = vmatpush.bf16.msra.mxu0 %v641
    %655 = vmatpush.bf16.msra.mxu0 %v640
    %656 = vmatpush.bf16.msra.mxu0 %v639
    %657 = vmatpush.bf16.msra.mxu0 %v638
    %658 = vmatpush.bf16.msra.mxu0 %v637
    %659 = vmatpush.bf16.msra.mxu0 %v636
    %660 = vmatmul.bf16.gmra.mxu0 %v580
    %v661 = vpop.f32.mrf.mxu0
    %v662 = vadd.f32 0.0, %v661
    %v663 = vpop.f32.mrf.mxu0
    %v664 = vadd.f32 0.0, %v663
    %665 = vmatmul.bf16.gmra.mxu0 %v581
    %v666 = vpop.f32.mrf.mxu0
    %v667 = vadd.f32 0.0, %v666
    %v668 = vpop.f32.mrf.mxu0
    %v669 = vadd.f32 0.0, %v668
    %670 = vmatmul.bf16.gmra.mxu0 %v582
    %v671 = vpop.f32.mrf.mxu0
    %v672 = vadd.f32 0.0, %v671
    %v673 = vpop.f32.mrf.mxu0
    %v674 = vadd.f32 0.0, %v673
    %675 = vmatmul.bf16.gmra.mxu0 %v583
    %v676 = vpop.f32.mrf.mxu0
    %v677 = vadd.f32 0.0, %v676
    %v678 = vpop.f32.mrf.mxu0
    %v679 = vadd.f32 0.0, %v678
    %680 = vmatmul.bf16.gmra.mxu0 %v584
    %v681 = vpop.f32.mrf.mxu0
    %v682 = vadd.f32 0.0, %v681
    %v683 = vpop.f32.mrf.mxu0
    %v684 = vadd.f32 0.0, %v683
    %685 = vmatmul.bf16.gmra.mxu0 %v585
    %v686 = vpop.f32.mrf.mxu0
    %v687 = vadd.f32 0.0, %v686
    %v688 = vpop.f32.mrf.mxu0
    %v689 = vadd.f32 0.0, %v688
    %690 = vmatmul.bf16.gmra.mxu0 %v586
    %v691 = vpop.f32.mrf.mxu0
    %v692 = vadd.f32 0.0, %v691
    %v693 = vpop.f32.mrf.mxu0
    %v694 = vadd.f32 0.0, %v693
    %695 = vmatmul.bf16.gmra.mxu0 %v587
    %v696 = vpop.f32.mrf.mxu0
    %v697 = vadd.f32 0.0, %v696
    %v698 = vpop.f32.mrf.mxu0
    %v699 = vadd.f32 0.0, %v698
    %700 = vdwg.mxu0
    %v701 = vpack.c.bf16 %v664, %v662
    %v702 = vpack.c.bf16 %v669, %v667
    %v703 = vpack.c.bf16 %v674, %v672
    %v704 = vpack.c.bf16 %v679, %v677
    %v705 = vpack.c.bf16 %v684, %v682
    %v706 = vpack.c.bf16 %v689, %v687
    %v707 = vpack.c.bf16 %v694, %v692
    %v708 = vpack.c.bf16 %v699, %v697
    %v709 = vld [vmem:[%s8] sm:$0x1]
    %v711 = vperm.slane %v709, 0
    %713 = vmatpush.bf16.msra.mxu0 %v708
    %714 = vmatpush.bf16.msra.mxu0 %v707
    %715 = vmatpush.bf16.msra.mxu0 %v706
    %716 = vmatpush.bf16.msra.mxu0 %v705
    %717 = vmatpush.bf16.msra.mxu0 %v704
    %718 = vmatpush.bf16.msra.mxu0 %v703
    %719 = vmatpush.bf16.msra.mxu0 %v702
    %720 = vmatpush.bf16.msra.mxu0 %v701
    %721 = vmatmul.bf16.gmra.mxu0 %v293
    %v722 = vpop.f32.mrf.mxu0
    %v723 = vadd.f32 %v711, %v722
    %v724 = vpop.f32.mrf.mxu0
    %v725 = vadd.f32 %v711, %v724
    %726 = vmatmul.bf16.gmra.mxu0 %v294
    %v727 = vpop.f32.mrf.mxu0
    %v728 = vadd.f32 %v711, %v727
    %v729 = vpop.f32.mrf.mxu0
    %v730 = vadd.f32 %v711, %v729
    %731 = vmatmul.bf16.gmra.mxu0 %v295
    %v732 = vpop.f32.mrf.mxu0
    %v733 = vadd.f32 %v711, %v732
    %v734 = vpop.f32.mrf.mxu0
    %v735 = vadd.f32 %v711, %v734
    %736 = vmatmul.bf16.gmra.mxu0 %v296
    %v737 = vpop.f32.mrf.mxu0
    %v738 = vadd.f32 %v711, %v737
    %v739 = vpop.f32.mrf.mxu0
    %v740 = vadd.f32 %v711, %v739
    %741 = vmatmul.bf16.gmra.mxu0 %v297
    %v742 = vpop.f32.mrf.mxu0
    %v743 = vadd.f32 %v711, %v742
    %v744 = vpop.f32.mrf.mxu0
    %v745 = vadd.f32 %v711, %v744
    %746 = vmatmul.bf16.gmra.mxu0 %v298
    %v747 = vpop.f32.mrf.mxu0
    %v748 = vadd.f32 %v711, %v747
    %v749 = vpop.f32.mrf.mxu0
    %v750 = vadd.f32 %v711, %v749
    %751 = vmatmul.bf16.gmra.mxu0 %v299
    %v752 = vpop.f32.mrf.mxu0
    %v753 = vadd.f32 %v711, %v752
    %v754 = vpop.f32.mrf.mxu0
    %v755 = vadd.f32 %v711, %v754
    %756 = vmatmul.bf16.gmra.mxu0 %v300
    %v757 = vpop.f32.mrf.mxu0
    %v758 = vadd.f32 %v711, %v757
    %v759 = vpop.f32.mrf.mxu0
    %v760 = vadd.f32 %v711, %v759
    %761 = vdwg.mxu0
    %vm762 = vcmp.ge.f32.partialorder %v723, 0.0
    %vm763 = vcmp.ge.f32.partialorder %v725, 0.0
    %vm764 = vcmp.ge.f32.partialorder %v728, 0.0
    %vm765 = vcmp.ge.f32.partialorder %v730, 0.0
    %vm766 = vcmp.ge.f32.partialorder %v733, 0.0
    %vm767 = vcmp.ge.f32.partialorder %v735, 0.0
    %vm768 = vcmp.ge.f32.partialorder %v738, 0.0
    %vm769 = vcmp.ge.f32.partialorder %v740, 0.0
    %vm770 = vcmp.ge.f32.partialorder %v743, 0.0
    %vm771 = vcmp.ge.f32.partialorder %v745, 0.0
    %vm772 = vcmp.ge.f32.partialorder %v748, 0.0
    %vm773 = vcmp.ge.f32.partialorder %v750, 0.0
    %vm774 = vcmp.ge.f32.partialorder %v753, 0.0
    %vm775 = vcmp.ge.f32.partialorder %v755, 0.0
    %vm776 = vcmp.ge.f32.partialorder %v758, 0.0
    %vm777 = vcmp.ge.f32.partialorder %v760, 0.0
    %v778 = vstv %s228
    %v779 = vmul.f32 %v778, %v723
    %v780 = vmul.f32 %v778, %v725
    %v781 = vmul.f32 %v778, %v728
    %v782 = vmul.f32 %v778, %v730
    %v783 = vmul.f32 %v778, %v733
    %v784 = vmul.f32 %v778, %v735
    %v785 = vmul.f32 %v778, %v738
    %v786 = vmul.f32 %v778, %v740
    %v787 = vmul.f32 %v778, %v743
    %v788 = vmul.f32 %v778, %v745
    %v789 = vmul.f32 %v778, %v748
    %v790 = vmul.f32 %v778, %v750
    %v791 = vmul.f32 %v778, %v753
    %v792 = vmul.f32 %v778, %v755
    %v793 = vmul.f32 %v778, %v758
    %v794 = vmul.f32 %v778, %v760
    %v795 = vsel %vm762, %v723, %v779
    %v796 = vsel %vm763, %v725, %v780
    %v797 = vsel %vm764, %v728, %v781
    %v798 = vsel %vm765, %v730, %v782
    %v799 = vsel %vm766, %v733, %v783
    %v800 = vsel %vm767, %v735, %v784
    %v801 = vsel %vm768, %v738, %v785
    %v802 = vsel %vm769, %v740, %v786
    %v803 = vsel %vm770, %v743, %v787
    %v804 = vsel %vm771, %v745, %v788
    %v805 = vsel %vm772, %v748, %v789
    %v806 = vsel %vm773, %v750, %v790
    %v807 = vsel %vm774, %v753, %v791
    %v808 = vsel %vm775, %v755, %v792
    %v809 = vsel %vm776, %v758, %v793
    %v810 = vsel %vm777, %v760, %v794
    %v811 = vpack.c.bf16 %v796, %v795
    %v812 = vpack.c.bf16 %v798, %v797
    %v813 = vpack.c.bf16 %v800, %v799
    %v814 = vpack.c.bf16 %v802, %v801
    %v815 = vpack.c.bf16 %v804, %v803
    %v816 = vpack.c.bf16 %v806, %v805
    %v817 = vpack.c.bf16 %v808, %v807
    %v818 = vpack.c.bf16 %v810, %v809
    %v819 = vld [vmem:[#allocation17] sm:$0xf]
    %v820 = vld [vmem:[#allocation17 + $0x4] sm:$0xf]
    %v821 = vld [vmem:[#allocation17 + $0x8] sm:$0xf]
    %v822 = vld [vmem:[#allocation17 + $0xc] sm:$0xf]
    %v823 = vld [vmem:[#allocation17 + $0x10] sm:$0xf]
    %v824 = vld [vmem:[#allocation17 + $0x14] sm:$0xf]
    %v825 = vld [vmem:[#allocation17 + $0x18] sm:$0xf]
    %v826 = vld [vmem:[#allocation17 + $0x1c] sm:$0xf]
    %v827 = vld [vmem:[#allocation17 + $0x20] sm:$0xf]
    %v828 = vld [vmem:[#allocation17 + $0x24] sm:$0xf]
    %v829 = vld [vmem:[#allocation17 + $0x28] sm:$0xf]
    %v830 = vld [vmem:[#allocation17 + $0x2c] sm:$0xf]
    %v831 = vld [vmem:[#allocation17 + $0x30] sm:$0xf]
    %v832 = vld [vmem:[#allocation17 + $0x34] sm:$0xf]
    %v833 = vld [vmem:[#allocation17 + $0x38] sm:$0xf]
    %v834 = vld [vmem:[#allocation17 + $0x3c] sm:$0xf]
    %v835 = vld [vmem:[%s14] sm:$0x1]
    %v837 = vperm.slane %v835, 0
    %v855 = vunpack.c.l.b16 %v819
    %v856 = vunpack.c.l.b16 %v820
    %v857 = vunpack.c.l.b16 %v821
    %v858 = vunpack.c.l.b16 %v822
    %v859 = vunpack.c.l.b16 %v823
    %v860 = vunpack.c.l.b16 %v824
    %v861 = vunpack.c.l.b16 %v825
    %v862 = vunpack.c.l.b16 %v826
    %v863 = vunpack.c.l.b16 %v827
    %v864 = vunpack.c.l.b16 %v828
    %v865 = vunpack.c.l.b16 %v829
    %v866 = vunpack.c.l.b16 %v830
    %v867 = vunpack.c.l.b16 %v831
    %v868 = vunpack.c.l.b16 %v832
    %v869 = vunpack.c.l.b16 %v833
    %v870 = vunpack.c.l.b16 %v834
    %v871 = vpack.c.b16 %v856, %v855
    %v872 = vpack.c.b16 %v858, %v857
    %v873 = vpack.c.b16 %v860, %v859
    %v874 = vpack.c.b16 %v862, %v861
    %v875 = vpack.c.b16 %v864, %v863
    %v876 = vpack.c.b16 %v866, %v865
    %v877 = vpack.c.b16 %v868, %v867
    %v878 = vpack.c.b16 %v870, %v869
    %887 = vmatpush.bf16.msra.mxu0 %v878
    %888 = vmatpush.bf16.msra.mxu0 %v877
    %889 = vmatpush.bf16.msra.mxu0 %v876
    %890 = vmatpush.bf16.msra.mxu0 %v875
    %891 = vmatpush.bf16.msra.mxu0 %v874
    %892 = vmatpush.bf16.msra.mxu0 %v873
    %893 = vmatpush.bf16.msra.mxu0 %v872
    %894 = vmatpush.bf16.msra.mxu0 %v871
    %895 = vmatmul.bf16.gmra.mxu0 %v811
    %v896 = vpop.f32.mrf.mxu0
    %v897 = vadd.f32 %v837, %v896
    %v898 = vpop.f32.mrf.mxu0
    %v899 = vadd.f32 %v837, %v898
    %900 = vmatmul.bf16.gmra.mxu0 %v812
    %v901 = vpop.f32.mrf.mxu0
    %v902 = vadd.f32 %v837, %v901
    %v903 = vpop.f32.mrf.mxu0
    %v904 = vadd.f32 %v837, %v903
    %905 = vmatmul.bf16.gmra.mxu0 %v813
    %v906 = vpop.f32.mrf.mxu0
    %v907 = vadd.f32 %v837, %v906
    %v908 = vpop.f32.mrf.mxu0
    %v909 = vadd.f32 %v837, %v908
    %910 = vmatmul.bf16.gmra.mxu0 %v814
    %v911 = vpop.f32.mrf.mxu0
    %v912 = vadd.f32 %v837, %v911
    %v913 = vpop.f32.mrf.mxu0
    %v914 = vadd.f32 %v837, %v913
    %915 = vmatmul.bf16.gmra.mxu0 %v815
    %v916 = vpop.f32.mrf.mxu0
    %v917 = vadd.f32 %v837, %v916
    %v918 = vpop.f32.mrf.mxu0
    %v919 = vadd.f32 %v837, %v918
    %920 = vmatmul.bf16.gmra.mxu0 %v816
    %v921 = vpop.f32.mrf.mxu0
    %v922 = vadd.f32 %v837, %v921
    %v923 = vpop.f32.mrf.mxu0
    %v924 = vadd.f32 %v837, %v923
    %925 = vmatmul.bf16.gmra.mxu0 %v817
    %v926 = vpop.f32.mrf.mxu0
    %v927 = vadd.f32 %v837, %v926
    %v928 = vpop.f32.mrf.mxu0
    %v929 = vadd.f32 %v837, %v928
    %930 = vmatmul.bf16.gmra.mxu0 %v818
    %v931 = vpop.f32.mrf.mxu0
    %v932 = vadd.f32 %v837, %v931
    %v933 = vpop.f32.mrf.mxu0
    %v934 = vadd.f32 %v837, %v933
    %935 = vdwg.mxu0
    %s936 = sld [smem:[#allocation2 + $0x2]]
    %vm937 = vcmp.ge.f32.partialorder %v897, 0.0
    %vm938 = vcmp.ge.f32.partialorder %v899, 0.0
    %vm939 = vcmp.ge.f32.partialorder %v902, 0.0
    %vm940 = vcmp.ge.f32.partialorder %v904, 0.0
    %vm941 = vcmp.ge.f32.partialorder %v907, 0.0
    %vm942 = vcmp.ge.f32.partialorder %v909, 0.0
    %vm943 = vcmp.ge.f32.partialorder %v912, 0.0
    %vm944 = vcmp.ge.f32.partialorder %v914, 0.0
    %vm945 = vcmp.ge.f32.partialorder %v917, 0.0
    %vm946 = vcmp.ge.f32.partialorder %v919, 0.0
    %vm947 = vcmp.ge.f32.partialorder %v922, 0.0
    %vm948 = vcmp.ge.f32.partialorder %v924, 0.0
    %vm949 = vcmp.ge.f32.partialorder %v927, 0.0
    %vm950 = vcmp.ge.f32.partialorder %v929, 0.0
    %vm951 = vcmp.ge.f32.partialorder %v932, 0.0
    %vm952 = vcmp.ge.f32.partialorder %v934, 0.0
    %v953 = vstv %s936
    %v954 = vmul.f32 %v953, %v897
    %v955 = vmul.f32 %v953, %v899
    %v956 = vmul.f32 %v953, %v902
    %v957 = vmul.f32 %v953, %v904
    %v958 = vmul.f32 %v953, %v907
    %v959 = vmul.f32 %v953, %v909
    %v960 = vmul.f32 %v953, %v912
    %v961 = vmul.f32 %v953, %v914
    %v962 = vmul.f32 %v953, %v917
    %v963 = vmul.f32 %v953, %v919
    %v964 = vmul.f32 %v953, %v922
    %v965 = vmul.f32 %v953, %v924
    %v966 = vmul.f32 %v953, %v927
    %v967 = vmul.f32 %v953, %v929
    %v968 = vmul.f32 %v953, %v932
    %v969 = vmul.f32 %v953, %v934
    %v970 = vsel %vm937, %v897, %v954
    %v971 = vsel %vm938, %v899, %v955
    %v972 = vsel %vm939, %v902, %v956
    %v973 = vsel %vm940, %v904, %v957
    %v974 = vsel %vm941, %v907, %v958
    %v975 = vsel %vm942, %v909, %v959
    %v976 = vsel %vm943, %v912, %v960
    %v977 = vsel %vm944, %v914, %v961
    %v978 = vsel %vm945, %v917, %v962
    %v979 = vsel %vm946, %v919, %v963
    %v980 = vsel %vm947, %v922, %v964
    %v981 = vsel %vm948, %v924, %v965
    %v982 = vsel %vm949, %v927, %v966
    %v983 = vsel %vm950, %v929, %v967
    %v984 = vsel %vm951, %v932, %v968
    %v985 = vsel %vm952, %v934, %v969
    %v986 = vpack.c.bf16 %v971, %v970
    %v987 = vpack.c.bf16 %v973, %v972
    %v988 = vpack.c.bf16 %v975, %v974
    %v989 = vpack.c.bf16 %v977, %v976
    %v990 = vpack.c.bf16 %v979, %v978
    %v991 = vpack.c.bf16 %v981, %v980
    %v992 = vpack.c.bf16 %v983, %v982
    %v993 = vpack.c.bf16 %v985, %v984
    %v994 = vld [vmem:[#allocation18] sm:$0xf]
    %v995 = vld [vmem:[#allocation18 + $0x4] sm:$0xf]
    %v996 = vld [vmem:[#allocation18 + $0x8] sm:$0xf]
    %v997 = vld [vmem:[#allocation18 + $0xc] sm:$0xf]
    %v998 = vld [vmem:[#allocation18 + $0x10] sm:$0xf]
    %v999 = vld [vmem:[#allocation18 + $0x14] sm:$0xf]
    %v1000 = vld [vmem:[#allocation18 + $0x18] sm:$0xf]
    %v1001 = vld [vmem:[#allocation18 + $0x1c] sm:$0xf]
    %v1002 = vld [vmem:[#allocation18 + $0x20] sm:$0xf]
    %v1003 = vld [vmem:[#allocation18 + $0x24] sm:$0xf]
    %v1004 = vld [vmem:[#allocation18 + $0x28] sm:$0xf]
    %v1005 = vld [vmem:[#allocation18 + $0x2c] sm:$0xf]
    %v1006 = vld [vmem:[#allocation18 + $0x30] sm:$0xf]
    %v1007 = vld [vmem:[#allocation18 + $0x34] sm:$0xf]
    %v1008 = vld [vmem:[#allocation18 + $0x38] sm:$0xf]
    %v1009 = vld [vmem:[#allocation18 + $0x3c] sm:$0xf]
    %v1010 = vld [vmem:[%s16] sm:$0x1]
    %v1012 = vperm.slane %v1010, 0
    %v1030 = vunpack.c.l.b16 %v994
    %v1031 = vunpack.c.l.b16 %v995
    %v1032 = vunpack.c.l.b16 %v996
    %v1033 = vunpack.c.l.b16 %v997
    %v1034 = vunpack.c.l.b16 %v998
    %v1035 = vunpack.c.l.b16 %v999
    %v1036 = vunpack.c.l.b16 %v1000
    %v1037 = vunpack.c.l.b16 %v1001
    %v1038 = vunpack.c.l.b16 %v1002
    %v1039 = vunpack.c.l.b16 %v1003
    %v1040 = vunpack.c.l.b16 %v1004
    %v1041 = vunpack.c.l.b16 %v1005
    %v1042 = vunpack.c.l.b16 %v1006
    %v1043 = vunpack.c.l.b16 %v1007
    %v1044 = vunpack.c.l.b16 %v1008
    %v1045 = vunpack.c.l.b16 %v1009
    %v1046 = vpack.c.b16 %v1031, %v1030
    %v1047 = vpack.c.b16 %v1033, %v1032
    %v1048 = vpack.c.b16 %v1035, %v1034
    %v1049 = vpack.c.b16 %v1037, %v1036
    %v1050 = vpack.c.b16 %v1039, %v1038
    %v1051 = vpack.c.b16 %v1041, %v1040
    %v1052 = vpack.c.b16 %v1043, %v1042
    %v1053 = vpack.c.b16 %v1045, %v1044
    %1062 = vmatpush.bf16.msra.mxu0 %v1053
    %1063 = vmatpush.bf16.msra.mxu0 %v1052
    %1064 = vmatpush.bf16.msra.mxu0 %v1051
    %1065 = vmatpush.bf16.msra.mxu0 %v1050
    %1066 = vmatpush.bf16.msra.mxu0 %v1049
    %1067 = vmatpush.bf16.msra.mxu0 %v1048
    %1068 = vmatpush.bf16.msra.mxu0 %v1047
    %1069 = vmatpush.bf16.msra.mxu0 %v1046
    %1070 = vmatmul.bf16.gmra.mxu0 %v986
    %v1071 = vpop.f32.mrf.mxu0
    %v1072 = vadd.f32 %v1012, %v1071
    %v1073 = vpop.f32.mrf.mxu0
    %v1074 = vadd.f32 %v1012, %v1073
    %1075 = vmatmul.bf16.gmra.mxu0 %v987
    %v1076 = vpop.f32.mrf.mxu0
    %v1077 = vadd.f32 %v1012, %v1076
    %v1078 = vpop.f32.mrf.mxu0
    %v1079 = vadd.f32 %v1012, %v1078
    %1080 = vmatmul.bf16.gmra.mxu0 %v988
    %v1081 = vpop.f32.mrf.mxu0
    %v1082 = vadd.f32 %v1012, %v1081
    %v1083 = vpop.f32.mrf.mxu0
    %v1084 = vadd.f32 %v1012, %v1083
    %1085 = vmatmul.bf16.gmra.mxu0 %v989
    %v1086 = vpop.f32.mrf.mxu0
    %v1087 = vadd.f32 %v1012, %v1086
    %v1088 = vpop.f32.mrf.mxu0
    %v1089 = vadd.f32 %v1012, %v1088
    %1090 = vmatmul.bf16.gmra.mxu0 %v990
    %v1091 = vpop.f32.mrf.mxu0
    %v1092 = vadd.f32 %v1012, %v1091
    %v1093 = vpop.f32.mrf.mxu0
    %v1094 = vadd.f32 %v1012, %v1093
    %1095 = vmatmul.bf16.gmra.mxu0 %v991
    %v1096 = vpop.f32.mrf.mxu0
    %v1097 = vadd.f32 %v1012, %v1096
    %v1098 = vpop.f32.mrf.mxu0
    %v1099 = vadd.f32 %v1012, %v1098
    %1100 = vmatmul.bf16.gmra.mxu0 %v992
    %v1101 = vpop.f32.mrf.mxu0
    %v1102 = vadd.f32 %v1012, %v1101
    %v1103 = vpop.f32.mrf.mxu0
    %v1104 = vadd.f32 %v1012, %v1103
    %1105 = vmatmul.bf16.gmra.mxu0 %v993
    %v1106 = vpop.f32.mrf.mxu0
    %v1107 = vadd.f32 %v1012, %v1106
    %v1108 = vpop.f32.mrf.mxu0
    %v1109 = vadd.f32 %v1012, %v1108
    %1110 = vdwg.mxu0
    %v1111 = vpack.c.bf16 %v1072, %v1072
    %v1112 = vpack.c.bf16 %v1074, %v1074
    %v1113 = vpack.c.bf16 %v1077, %v1077
    %v1114 = vpack.c.bf16 %v1079, %v1079
    %v1115 = vpack.c.bf16 %v1082, %v1082
    %v1116 = vpack.c.bf16 %v1084, %v1084
    %v1117 = vpack.c.bf16 %v1087, %v1087
    %v1118 = vpack.c.bf16 %v1089, %v1089
    %v1119 = vpack.c.bf16 %v1092, %v1092
    %v1120 = vpack.c.bf16 %v1094, %v1094
    %v1121 = vpack.c.bf16 %v1097, %v1097
    %v1122 = vpack.c.bf16 %v1099, %v1099
    %v1123 = vpack.c.bf16 %v1102, %v1102
    %v1124 = vpack.c.bf16 %v1104, %v1104
    %v1125 = vpack.c.bf16 %v1107, %v1107
    %v1126 = vpack.c.bf16 %v1109, %v1109
    %1127 = vst [vmem:[%s17] sm:$0xf] %v1111
    %1128 = vst [vmem:[%s17 + $0x4] sm:$0xf] %v1112
    %1129 = vst [vmem:[%s17 + $0x8] sm:$0xf] %v1113
    %1130 = vst [vmem:[%s17 + $0xc] sm:$0xf] %v1114
    %1131 = vst [vmem:[%s17 + $0x10] sm:$0xf] %v1115
    %1132 = vst [vmem:[%s17 + $0x14] sm:$0xf] %v1116
    %1133 = vst [vmem:[%s17 + $0x18] sm:$0xf] %v1117
    %1134 = vst [vmem:[%s17 + $0x1c] sm:$0xf] %v1118
    %1135 = vst [vmem:[%s17 + $0x20] sm:$0xf] %v1119
    %1136 = vst [vmem:[%s17 + $0x24] sm:$0xf] %v1120
    %1137 = vst [vmem:[%s17 + $0x28] sm:$0xf] %v1121
    %1138 = vst [vmem:[%s17 + $0x2c] sm:$0xf] %v1122
    %1139 = vst [vmem:[%s17 + $0x30] sm:$0xf] %v1123
    %1140 = vst [vmem:[%s17 + $0x34] sm:$0xf] %v1124
    %1141 = vst [vmem:[%s17 + $0x38] sm:$0xf] %v1125
    %1142 = vst [vmem:[%s17 + $0x3c] sm:$0xf] %v1126
    %s1143 = sld [smem:[#allocation2 + $0x3]]
    %s1144 = sld [smem:[#allocation2 + $0x4]]
    %v1145 = vld [vmem:[#allocation8] sm:$0xf]
    %v1146 = vld [vmem:[#allocation8 + $0x4] sm:$0xf]
    %v1147 = vld [vmem:[#allocation8 + $0x8] sm:$0xf]
    %v1148 = vld [vmem:[#allocation8 + $0xc] sm:$0xf]
    %v1149 = vld [vmem:[#allocation8 + $0x10] sm:$0xf]
    %v1150 = vld [vmem:[#allocation8 + $0x14] sm:$0xf]
    %v1151 = vld [vmem:[#allocation8 + $0x18] sm:$0xf]
    %v1152 = vld [vmem:[#allocation8 + $0x1c] sm:$0xf]
    %v1153 = vld [vmem:[#allocation8 + $0x20] sm:$0xf]
    %v1154 = vld [vmem:[#allocation8 + $0x24] sm:$0xf]
    %v1155 = vld [vmem:[#allocation8 + $0x28] sm:$0xf]
    %v1156 = vld [vmem:[#allocation8 + $0x2c] sm:$0xf]
    %v1157 = vld [vmem:[#allocation8 + $0x30] sm:$0xf]
    %v1158 = vld [vmem:[#allocation8 + $0x34] sm:$0xf]
    %v1159 = vld [vmem:[#allocation8 + $0x38] sm:$0xf]
    %v1160 = vld [vmem:[#allocation8 + $0x3c] sm:$0xf]
    %v1161 = vld [vmem:[#allocation9] sm:$0xf]
    %v1162 = vld [vmem:[#allocation9 + $0x4] sm:$0xf]
    %v1163 = vld [vmem:[#allocation9 + $0x8] sm:$0xf]
    %v1164 = vld [vmem:[#allocation9 + $0xc] sm:$0xf]
    %v1165 = vld [vmem:[#allocation9 + $0x10] sm:$0xf]
    %v1166 = vld [vmem:[#allocation9 + $0x14] sm:$0xf]
    %v1167 = vld [vmem:[#allocation9 + $0x18] sm:$0xf]
    %v1168 = vld [vmem:[#allocation9 + $0x1c] sm:$0xf]
    %v1169 = vld [vmem:[#allocation9 + $0x20] sm:$0xf]
    %v1170 = vld [vmem:[#allocation9 + $0x24] sm:$0xf]
    %v1171 = vld [vmem:[#allocation9 + $0x28] sm:$0xf]
    %v1172 = vld [vmem:[#allocation9 + $0x2c] sm:$0xf]
    %v1173 = vld [vmem:[#allocation9 + $0x30] sm:$0xf]
    %v1174 = vld [vmem:[#allocation9 + $0x34] sm:$0xf]
    %v1175 = vld [vmem:[#allocation9 + $0x38] sm:$0xf]
    %v1176 = vld [vmem:[#allocation9 + $0x3c] sm:$0xf]
    %v1193 = vunpack.c.l.b16 %v1145
    %v1194 = vunpack.c.l.b16 %v1146
    %v1195 = vunpack.c.l.b16 %v1147
    %v1196 = vunpack.c.l.b16 %v1148
    %v1197 = vunpack.c.l.b16 %v1149
    %v1198 = vunpack.c.l.b16 %v1150
    %v1199 = vunpack.c.l.b16 %v1151
    %v1200 = vunpack.c.l.b16 %v1152
    %v1201 = vunpack.c.l.b16 %v1153
    %v1202 = vunpack.c.l.b16 %v1154
    %v1203 = vunpack.c.l.b16 %v1155
    %v1204 = vunpack.c.l.b16 %v1156
    %v1205 = vunpack.c.l.b16 %v1157
    %v1206 = vunpack.c.l.b16 %v1158
    %v1207 = vunpack.c.l.b16 %v1159
    %v1208 = vunpack.c.l.b16 %v1160
    %v1209 = vpack.c.b16 %v1194, %v1193
    %v1210 = vpack.c.b16 %v1196, %v1195
    %v1211 = vpack.c.b16 %v1198, %v1197
    %v1212 = vpack.c.b16 %v1200, %v1199
    %v1213 = vpack.c.b16 %v1202, %v1201
    %v1214 = vpack.c.b16 %v1204, %v1203
    %v1215 = vpack.c.b16 %v1206, %v1205
    %v1216 = vpack.c.b16 %v1208, %v1207
    %v1241 = vunpack.c.l.b16 %v1161
    %v1242 = vunpack.c.l.b16 %v1162
    %v1243 = vunpack.c.l.b16 %v1163
    %v1244 = vunpack.c.l.b16 %v1164
    %v1245 = vunpack.c.l.b16 %v1165
    %v1246 = vunpack.c.l.b16 %v1166
    %v1247 = vunpack.c.l.b16 %v1167
    %v1248 = vunpack.c.l.b16 %v1168
    %v1249 = vunpack.c.l.b16 %v1169
    %v1250 = vunpack.c.l.b16 %v1170
    %v1251 = vunpack.c.l.b16 %v1171
    %v1252 = vunpack.c.l.b16 %v1172
    %v1253 = vunpack.c.l.b16 %v1173
    %v1254 = vunpack.c.l.b16 %v1174
    %v1255 = vunpack.c.l.b16 %v1175
    %v1256 = vunpack.c.l.b16 %v1176
    %v1257 = vpack.c.b16 %v1242, %v1241
    %v1258 = vpack.c.b16 %v1244, %v1243
    %v1259 = vpack.c.b16 %v1246, %v1245
    %v1260 = vpack.c.b16 %v1248, %v1247
    %v1261 = vpack.c.b16 %v1250, %v1249
    %v1262 = vpack.c.b16 %v1252, %v1251
    %v1263 = vpack.c.b16 %v1254, %v1253
    %v1264 = vpack.c.b16 %v1256, %v1255
    %1273 = vmatpush.bf16.msra.mxu0 %v1264
    %1274 = vmatpush.bf16.msra.mxu0 %v1263
    %1275 = vmatpush.bf16.msra.mxu0 %v1262
    %1276 = vmatpush.bf16.msra.mxu0 %v1261
    %1277 = vmatpush.bf16.msra.mxu0 %v1260
    %1278 = vmatpush.bf16.msra.mxu0 %v1259
    %1279 = vmatpush.bf16.msra.mxu0 %v1258
    %1280 = vmatpush.bf16.msra.mxu0 %v1257
    %1281 = vmatmul.bf16.gmra.mxu0 %v1209
    %v1282 = vpop.f32.mrf.mxu0
    %v1283 = vadd.f32 0.0, %v1282
    %v1284 = vpop.f32.mrf.mxu0
    %v1285 = vadd.f32 0.0, %v1284
    %1286 = vmatmul.bf16.gmra.mxu0 %v1210
    %v1287 = vpop.f32.mrf.mxu0
    %v1288 = vadd.f32 0.0, %v1287
    %v1289 = vpop.f32.mrf.mxu0
    %v1290 = vadd.f32 0.0, %v1289
    %1291 = vmatmul.bf16.gmra.mxu0 %v1211
    %v1292 = vpop.f32.mrf.mxu0
    %v1293 = vadd.f32 0.0, %v1292
    %v1294 = vpop.f32.mrf.mxu0
    %v1295 = vadd.f32 0.0, %v1294
    %1296 = vmatmul.bf16.gmra.mxu0 %v1212
    %v1297 = vpop.f32.mrf.mxu0
    %v1298 = vadd.f32 0.0, %v1297
    %v1299 = vpop.f32.mrf.mxu0
    %v1300 = vadd.f32 0.0, %v1299
    %1301 = vmatmul.bf16.gmra.mxu0 %v1213
    %v1302 = vpop.f32.mrf.mxu0
    %v1303 = vadd.f32 0.0, %v1302
    %v1304 = vpop.f32.mrf.mxu0
    %v1305 = vadd.f32 0.0, %v1304
    %1306 = vmatmul.bf16.gmra.mxu0 %v1214
    %v1307 = vpop.f32.mrf.mxu0
    %v1308 = vadd.f32 0.0, %v1307
    %v1309 = vpop.f32.mrf.mxu0
    %v1310 = vadd.f32 0.0, %v1309
    %1311 = vmatmul.bf16.gmra.mxu0 %v1215
    %v1312 = vpop.f32.mrf.mxu0
    %v1313 = vadd.f32 0.0, %v1312
    %v1314 = vpop.f32.mrf.mxu0
    %v1315 = vadd.f32 0.0, %v1314
    %1316 = vmatmul.bf16.gmra.mxu0 %v1216
    %v1317 = vpop.f32.mrf.mxu0
    %v1318 = vadd.f32 0.0, %v1317
    %v1319 = vpop.f32.mrf.mxu0
    %v1320 = vadd.f32 0.0, %v1319
    %1321 = vdwg.mxu0
    %v1322 = vpack.c.bf16 %v1285, %v1283
    %v1323 = vpack.c.bf16 %v1290, %v1288
    %v1324 = vpack.c.bf16 %v1295, %v1293
    %v1325 = vpack.c.bf16 %v1300, %v1298
    %v1326 = vpack.c.bf16 %v1305, %v1303
    %v1327 = vpack.c.bf16 %v1310, %v1308
    %v1328 = vpack.c.bf16 %v1315, %v1313
    %v1329 = vpack.c.bf16 %v1320, %v1318
    %v1330 = vld [vmem:[#allocation14] sm:$0xf]
    %v1331 = vld [vmem:[#allocation14 + $0x4] sm:$0xf]
    %v1332 = vld [vmem:[#allocation14 + $0x8] sm:$0xf]
    %v1333 = vld [vmem:[#allocation14 + $0xc] sm:$0xf]
    %v1334 = vld [vmem:[#allocation14 + $0x10] sm:$0xf]
    %v1335 = vld [vmem:[#allocation14 + $0x14] sm:$0xf]
    %v1336 = vld [vmem:[#allocation14 + $0x18] sm:$0xf]
    %v1337 = vld [vmem:[#allocation14 + $0x1c] sm:$0xf]
    %v1338 = vld [vmem:[#allocation14 + $0x20] sm:$0xf]
    %v1339 = vld [vmem:[#allocation14 + $0x24] sm:$0xf]
    %v1340 = vld [vmem:[#allocation14 + $0x28] sm:$0xf]
    %v1341 = vld [vmem:[#allocation14 + $0x2c] sm:$0xf]
    %v1342 = vld [vmem:[#allocation14 + $0x30] sm:$0xf]
    %v1343 = vld [vmem:[#allocation14 + $0x34] sm:$0xf]
    %v1344 = vld [vmem:[#allocation14 + $0x38] sm:$0xf]
    %v1345 = vld [vmem:[#allocation14 + $0x3c] sm:$0xf]
    %v1346 = vld [vmem:[%s10] sm:$0x1]
    %v1348 = vperm.slane %v1346, 0
    %v1366 = vunpack.c.l.b16 %v1330
    %v1367 = vunpack.c.l.b16 %v1331
    %v1368 = vunpack.c.l.b16 %v1332
    %v1369 = vunpack.c.l.b16 %v1333
    %v1370 = vunpack.c.l.b16 %v1334
    %v1371 = vunpack.c.l.b16 %v1335
    %v1372 = vunpack.c.l.b16 %v1336
    %v1373 = vunpack.c.l.b16 %v1337
    %v1374 = vunpack.c.l.b16 %v1338
    %v1375 = vunpack.c.l.b16 %v1339
    %v1376 = vunpack.c.l.b16 %v1340
    %v1377 = vunpack.c.l.b16 %v1341
    %v1378 = vunpack.c.l.b16 %v1342
    %v1379 = vunpack.c.l.b16 %v1343
    %v1380 = vunpack.c.l.b16 %v1344
    %v1381 = vunpack.c.l.b16 %v1345
    %v1382 = vpack.c.b16 %v1367, %v1366
    %v1383 = vpack.c.b16 %v1369, %v1368
    %v1384 = vpack.c.b16 %v1371, %v1370
    %v1385 = vpack.c.b16 %v1373, %v1372
    %v1386 = vpack.c.b16 %v1375, %v1374
    %v1387 = vpack.c.b16 %v1377, %v1376
    %v1388 = vpack.c.b16 %v1379, %v1378
    %v1389 = vpack.c.b16 %v1381, %v1380
    %1398 = vmatpush.bf16.msra.mxu0 %v1389
    %1399 = vmatpush.bf16.msra.mxu0 %v1388
    %1400 = vmatpush.bf16.msra.mxu0 %v1387
    %1401 = vmatpush.bf16.msra.mxu0 %v1386
    %1402 = vmatpush.bf16.msra.mxu0 %v1385
    %1403 = vmatpush.bf16.msra.mxu0 %v1384
    %1404 = vmatpush.bf16.msra.mxu0 %v1383
    %1405 = vmatpush.bf16.msra.mxu0 %v1382
    %1406 = vmatmul.bf16.gmra.mxu0 %v1322
    %v1407 = vpop.f32.mrf.mxu0
    %v1408 = vadd.f32 %v1348, %v1407
    %v1409 = vpop.f32.mrf.mxu0
    %v1410 = vadd.f32 %v1348, %v1409
    %1411 = vmatmul.bf16.gmra.mxu0 %v1323
    %v1412 = vpop.f32.mrf.mxu0
    %v1413 = vadd.f32 %v1348, %v1412
    %v1414 = vpop.f32.mrf.mxu0
    %v1415 = vadd.f32 %v1348, %v1414
    %1416 = vmatmul.bf16.gmra.mxu0 %v1324
    %v1417 = vpop.f32.mrf.mxu0
    %v1418 = vadd.f32 %v1348, %v1417
    %v1419 = vpop.f32.mrf.mxu0
    %v1420 = vadd.f32 %v1348, %v1419
    %1421 = vmatmul.bf16.gmra.mxu0 %v1325
    %v1422 = vpop.f32.mrf.mxu0
    %v1423 = vadd.f32 %v1348, %v1422
    %v1424 = vpop.f32.mrf.mxu0
    %v1425 = vadd.f32 %v1348, %v1424
    %1426 = vmatmul.bf16.gmra.mxu0 %v1326
    %v1427 = vpop.f32.mrf.mxu0
    %v1428 = vadd.f32 %v1348, %v1427
    %v1429 = vpop.f32.mrf.mxu0
    %v1430 = vadd.f32 %v1348, %v1429
    %1431 = vmatmul.bf16.gmra.mxu0 %v1327
    %v1432 = vpop.f32.mrf.mxu0
    %v1433 = vadd.f32 %v1348, %v1432
    %v1434 = vpop.f32.mrf.mxu0
    %v1435 = vadd.f32 %v1348, %v1434
    %1436 = vmatmul.bf16.gmra.mxu0 %v1328
    %v1437 = vpop.f32.mrf.mxu0
    %v1438 = vadd.f32 %v1348, %v1437
    %v1439 = vpop.f32.mrf.mxu0
    %v1440 = vadd.f32 %v1348, %v1439
    %1441 = vmatmul.bf16.gmra.mxu0 %v1329
    %v1442 = vpop.f32.mrf.mxu0
    %v1443 = vadd.f32 %v1348, %v1442
    %v1444 = vpop.f32.mrf.mxu0
    %v1445 = vadd.f32 %v1348, %v1444
    %1446 = vdwg.mxu0
    %vm1447 = vcmp.ge.f32.partialorder %v1408, 0.0
    %vm1448 = vcmp.ge.f32.partialorder %v1410, 0.0
    %vm1449 = vcmp.ge.f32.partialorder %v1413, 0.0
    %vm1450 = vcmp.ge.f32.partialorder %v1415, 0.0
    %vm1451 = vcmp.ge.f32.partialorder %v1418, 0.0
    %vm1452 = vcmp.ge.f32.partialorder %v1420, 0.0
    %vm1453 = vcmp.ge.f32.partialorder %v1423, 0.0
    %vm1454 = vcmp.ge.f32.partialorder %v1425, 0.0
    %vm1455 = vcmp.ge.f32.partialorder %v1428, 0.0
    %vm1456 = vcmp.ge.f32.partialorder %v1430, 0.0
    %vm1457 = vcmp.ge.f32.partialorder %v1433, 0.0
    %vm1458 = vcmp.ge.f32.partialorder %v1435, 0.0
    %vm1459 = vcmp.ge.f32.partialorder %v1438, 0.0
    %vm1460 = vcmp.ge.f32.partialorder %v1440, 0.0
    %vm1461 = vcmp.ge.f32.partialorder %v1443, 0.0
    %vm1462 = vcmp.ge.f32.partialorder %v1445, 0.0
    %v1463 = vstv %s1143
    %v1464 = vmul.f32 %v1463, %v1408
    %v1465 = vmul.f32 %v1463, %v1410
    %v1466 = vmul.f32 %v1463, %v1413
    %v1467 = vmul.f32 %v1463, %v1415
    %v1468 = vmul.f32 %v1463, %v1418
    %v1469 = vmul.f32 %v1463, %v1420
    %v1470 = vmul.f32 %v1463, %v1423
    %v1471 = vmul.f32 %v1463, %v1425
    %v1472 = vmul.f32 %v1463, %v1428
    %v1473 = vmul.f32 %v1463, %v1430
    %v1474 = vmul.f32 %v1463, %v1433
    %v1475 = vmul.f32 %v1463, %v1435
    %v1476 = vmul.f32 %v1463, %v1438
    %v1477 = vmul.f32 %v1463, %v1440
    %v1478 = vmul.f32 %v1463, %v1443
    %v1479 = vmul.f32 %v1463, %v1445
    %v1480 = vsel %vm1447, %v1408, %v1464
    %v1481 = vsel %vm1448, %v1410, %v1465
    %v1482 = vsel %vm1449, %v1413, %v1466
    %v1483 = vsel %vm1450, %v1415, %v1467
    %v1484 = vsel %vm1451, %v1418, %v1468
    %v1485 = vsel %vm1452, %v1420, %v1469
    %v1486 = vsel %vm1453, %v1423, %v1470
    %v1487 = vsel %vm1454, %v1425, %v1471
    %v1488 = vsel %vm1455, %v1428, %v1472
    %v1489 = vsel %vm1456, %v1430, %v1473
    %v1490 = vsel %vm1457, %v1433, %v1474
    %v1491 = vsel %vm1458, %v1435, %v1475
    %v1492 = vsel %vm1459, %v1438, %v1476
    %v1493 = vsel %vm1460, %v1440, %v1477
    %v1494 = vsel %vm1461, %v1443, %v1478
    %v1495 = vsel %vm1462, %v1445, %v1479
    %v1496 = vpack.c.bf16 %v1481, %v1480
    %v1497 = vpack.c.bf16 %v1483, %v1482
    %v1498 = vpack.c.bf16 %v1485, %v1484
    %v1499 = vpack.c.bf16 %v1487, %v1486
    %v1500 = vpack.c.bf16 %v1489, %v1488
    %v1501 = vpack.c.bf16 %v1491, %v1490
    %v1502 = vpack.c.bf16 %v1493, %v1492
    %v1503 = vpack.c.bf16 %v1495, %v1494
    %v1504 = vld [vmem:[#allocation15] sm:$0xf]
    %v1505 = vld [vmem:[#allocation15 + $0x4] sm:$0xf]
    %v1506 = vld [vmem:[#allocation15 + $0x8] sm:$0xf]
    %v1507 = vld [vmem:[#allocation15 + $0xc] sm:$0xf]
    %v1508 = vld [vmem:[#allocation15 + $0x10] sm:$0xf]
    %v1509 = vld [vmem:[#allocation15 + $0x14] sm:$0xf]
    %v1510 = vld [vmem:[#allocation15 + $0x18] sm:$0xf]
    %v1511 = vld [vmem:[#allocation15 + $0x1c] sm:$0xf]
    %v1512 = vld [vmem:[#allocation15 + $0x20] sm:$0xf]
    %v1513 = vld [vmem:[#allocation15 + $0x24] sm:$0xf]
    %v1514 = vld [vmem:[#allocation15 + $0x28] sm:$0xf]
    %v1515 = vld [vmem:[#allocation15 + $0x2c] sm:$0xf]
    %v1516 = vld [vmem:[#allocation15 + $0x30] sm:$0xf]
    %v1517 = vld [vmem:[#allocation15 + $0x34] sm:$0xf]
    %v1518 = vld [vmem:[#allocation15 + $0x38] sm:$0xf]
    %v1519 = vld [vmem:[#allocation15 + $0x3c] sm:$0xf]
    %v1536 = vunpack.c.l.b16 %v1504
    %v1537 = vunpack.c.l.b16 %v1505
    %v1538 = vunpack.c.l.b16 %v1506
    %v1539 = vunpack.c.l.b16 %v1507
    %v1540 = vunpack.c.l.b16 %v1508
    %v1541 = vunpack.c.l.b16 %v1509
    %v1542 = vunpack.c.l.b16 %v1510
    %v1543 = vunpack.c.l.b16 %v1511
    %v1544 = vunpack.c.l.b16 %v1512
    %v1545 = vunpack.c.l.b16 %v1513
    %v1546 = vunpack.c.l.b16 %v1514
    %v1547 = vunpack.c.l.b16 %v1515
    %v1548 = vunpack.c.l.b16 %v1516
    %v1549 = vunpack.c.l.b16 %v1517
    %v1550 = vunpack.c.l.b16 %v1518
    %v1551 = vunpack.c.l.b16 %v1519
    %v1552 = vpack.c.b16 %v1537, %v1536
    %v1553 = vpack.c.b16 %v1539, %v1538
    %v1554 = vpack.c.b16 %v1541, %v1540
    %v1555 = vpack.c.b16 %v1543, %v1542
    %v1556 = vpack.c.b16 %v1545, %v1544
    %v1557 = vpack.c.b16 %v1547, %v1546
    %v1558 = vpack.c.b16 %v1549, %v1548
    %v1559 = vpack.c.b16 %v1551, %v1550
    %1568 = vmatpush.bf16.msra.mxu0 %v1559
    %1569 = vmatpush.bf16.msra.mxu0 %v1558
    %1570 = vmatpush.bf16.msra.mxu0 %v1557
    %1571 = vmatpush.bf16.msra.mxu0 %v1556
    %1572 = vmatpush.bf16.msra.mxu0 %v1555
    %1573 = vmatpush.bf16.msra.mxu0 %v1554
    %1574 = vmatpush.bf16.msra.mxu0 %v1553
    %1575 = vmatpush.bf16.msra.mxu0 %v1552
    %1576 = vmatmul.bf16.gmra.mxu0 %v1496
    %v1577 = vpop.f32.mrf.mxu0
    %v1578 = vadd.f32 0.0, %v1577
    %v1579 = vpop.f32.mrf.mxu0
    %v1580 = vadd.f32 0.0, %v1579
    %1581 = vmatmul.bf16.gmra.mxu0 %v1497
    %v1582 = vpop.f32.mrf.mxu0
    %v1583 = vadd.f32 0.0, %v1582
    %v1584 = vpop.f32.mrf.mxu0
    %v1585 = vadd.f32 0.0, %v1584
    %1586 = vmatmul.bf16.gmra.mxu0 %v1498
    %v1587 = vpop.f32.mrf.mxu0
    %v1588 = vadd.f32 0.0, %v1587
    %v1589 = vpop.f32.mrf.mxu0
    %v1590 = vadd.f32 0.0, %v1589
    %1591 = vmatmul.bf16.gmra.mxu0 %v1499
    %v1592 = vpop.f32.mrf.mxu0
    %v1593 = vadd.f32 0.0, %v1592
    %v1594 = vpop.f32.mrf.mxu0
    %v1595 = vadd.f32 0.0, %v1594
    %1596 = vmatmul.bf16.gmra.mxu0 %v1500
    %v1597 = vpop.f32.mrf.mxu0
    %v1598 = vadd.f32 0.0, %v1597
    %v1599 = vpop.f32.mrf.mxu0
    %v1600 = vadd.f32 0.0, %v1599
    %1601 = vmatmul.bf16.gmra.mxu0 %v1501
    %v1602 = vpop.f32.mrf.mxu0
    %v1603 = vadd.f32 0.0, %v1602
    %v1604 = vpop.f32.mrf.mxu0
    %v1605 = vadd.f32 0.0, %v1604
    %1606 = vmatmul.bf16.gmra.mxu0 %v1502
    %v1607 = vpop.f32.mrf.mxu0
    %v1608 = vadd.f32 0.0, %v1607
    %v1609 = vpop.f32.mrf.mxu0
    %v1610 = vadd.f32 0.0, %v1609
    %1611 = vmatmul.bf16.gmra.mxu0 %v1503
    %v1612 = vpop.f32.mrf.mxu0
    %v1613 = vadd.f32 0.0, %v1612
    %v1614 = vpop.f32.mrf.mxu0
    %v1615 = vadd.f32 0.0, %v1614
    %1616 = vdwg.mxu0
    %v1617 = vpack.c.bf16 %v1580, %v1578
    %v1618 = vpack.c.bf16 %v1585, %v1583
    %v1619 = vpack.c.bf16 %v1590, %v1588
    %v1620 = vpack.c.bf16 %v1595, %v1593
    %v1621 = vpack.c.bf16 %v1600, %v1598
    %v1622 = vpack.c.bf16 %v1605, %v1603
    %v1623 = vpack.c.bf16 %v1610, %v1608
    %v1624 = vpack.c.bf16 %v1615, %v1613
    %v1625 = vld [vmem:[%s12] sm:$0x1]
    %v1627 = vperm.slane %v1625, 0
    %1629 = vmatpush.bf16.msra.mxu0 %v1624
    %1630 = vmatpush.bf16.msra.mxu0 %v1623
    %1631 = vmatpush.bf16.msra.mxu0 %v1622
    %1632 = vmatpush.bf16.msra.mxu0 %v1621
    %1633 = vmatpush.bf16.msra.mxu0 %v1620
    %1634 = vmatpush.bf16.msra.mxu0 %v1619
    %1635 = vmatpush.bf16.msra.mxu0 %v1618
    %1636 = vmatpush.bf16.msra.mxu0 %v1617
    %1637 = vmatmul.bf16.gmra.mxu0 %v1209
    %v1638 = vpop.f32.mrf.mxu0
    %v1639 = vadd.f32 %v1627, %v1638
    %v1640 = vpop.f32.mrf.mxu0
    %v1641 = vadd.f32 %v1627, %v1640
    %1642 = vmatmul.bf16.gmra.mxu0 %v1210
    %v1643 = vpop.f32.mrf.mxu0
    %v1644 = vadd.f32 %v1627, %v1643
    %v1645 = vpop.f32.mrf.mxu0
    %v1646 = vadd.f32 %v1627, %v1645
    %1647 = vmatmul.bf16.gmra.mxu0 %v1211
    %v1648 = vpop.f32.mrf.mxu0
    %v1649 = vadd.f32 %v1627, %v1648
    %v1650 = vpop.f32.mrf.mxu0
    %v1651 = vadd.f32 %v1627, %v1650
    %1652 = vmatmul.bf16.gmra.mxu0 %v1212
    %v1653 = vpop.f32.mrf.mxu0
    %v1654 = vadd.f32 %v1627, %v1653
    %v1655 = vpop.f32.mrf.mxu0
    %v1656 = vadd.f32 %v1627, %v1655
    %1657 = vmatmul.bf16.gmra.mxu0 %v1213
    %v1658 = vpop.f32.mrf.mxu0
    %v1659 = vadd.f32 %v1627, %v1658
    %v1660 = vpop.f32.mrf.mxu0
    %v1661 = vadd.f32 %v1627, %v1660
    %1662 = vmatmul.bf16.gmra.mxu0 %v1214
    %v1663 = vpop.f32.mrf.mxu0
    %v1664 = vadd.f32 %v1627, %v1663
    %v1665 = vpop.f32.mrf.mxu0
    %v1666 = vadd.f32 %v1627, %v1665
    %1667 = vmatmul.bf16.gmra.mxu0 %v1215
    %v1668 = vpop.f32.mrf.mxu0
    %v1669 = vadd.f32 %v1627, %v1668
    %v1670 = vpop.f32.mrf.mxu0
    %v1671 = vadd.f32 %v1627, %v1670
    %1672 = vmatmul.bf16.gmra.mxu0 %v1216
    %v1673 = vpop.f32.mrf.mxu0
    %v1674 = vadd.f32 %v1627, %v1673
    %v1675 = vpop.f32.mrf.mxu0
    %v1676 = vadd.f32 %v1627, %v1675
    %1677 = vdwg.mxu0
    %vm1678 = vcmp.ge.f32.partialorder %v1639, 0.0
    %vm1679 = vcmp.ge.f32.partialorder %v1641, 0.0
    %vm1680 = vcmp.ge.f32.partialorder %v1644, 0.0
    %vm1681 = vcmp.ge.f32.partialorder %v1646, 0.0
    %vm1682 = vcmp.ge.f32.partialorder %v1649, 0.0
    %vm1683 = vcmp.ge.f32.partialorder %v1651, 0.0
    %vm1684 = vcmp.ge.f32.partialorder %v1654, 0.0
    %vm1685 = vcmp.ge.f32.partialorder %v1656, 0.0
    %vm1686 = vcmp.ge.f32.partialorder %v1659, 0.0
    %vm1687 = vcmp.ge.f32.partialorder %v1661, 0.0
    %vm1688 = vcmp.ge.f32.partialorder %v1664, 0.0
    %vm1689 = vcmp.ge.f32.partialorder %v1666, 0.0
    %vm1690 = vcmp.ge.f32.partialorder %v1669, 0.0
    %vm1691 = vcmp.ge.f32.partialorder %v1671, 0.0
    %vm1692 = vcmp.ge.f32.partialorder %v1674, 0.0
    %vm1693 = vcmp.ge.f32.partialorder %v1676, 0.0
    %v1694 = vstv %s1144
    %v1695 = vmul.f32 %v1694, %v1639
    %v1696 = vmul.f32 %v1694, %v1641
    %v1697 = vmul.f32 %v1694, %v1644
    %v1698 = vmul.f32 %v1694, %v1646
    %v1699 = vmul.f32 %v1694, %v1649
    %v1700 = vmul.f32 %v1694, %v1651
    %v1701 = vmul.f32 %v1694, %v1654
    %v1702 = vmul.f32 %v1694, %v1656
    %v1703 = vmul.f32 %v1694, %v1659
    %v1704 = vmul.f32 %v1694, %v1661
    %v1705 = vmul.f32 %v1694, %v1664
    %v1706 = vmul.f32 %v1694, %v1666
    %v1707 = vmul.f32 %v1694, %v1669
    %v1708 = vmul.f32 %v1694, %v1671
    %v1709 = vmul.f32 %v1694, %v1674
    %v1710 = vmul.f32 %v1694, %v1676
    %v1711 = vsel %vm1678, %v1639, %v1695
    %v1712 = vsel %vm1679, %v1641, %v1696
    %v1713 = vsel %vm1680, %v1644, %v1697
    %v1714 = vsel %vm1681, %v1646, %v1698
    %v1715 = vsel %vm1682, %v1649, %v1699
    %v1716 = vsel %vm1683, %v1651, %v1700
    %v1717 = vsel %vm1684, %v1654, %v1701
    %v1718 = vsel %vm1685, %v1656, %v1702
    %v1719 = vsel %vm1686, %v1659, %v1703
    %v1720 = vsel %vm1687, %v1661, %v1704
    %v1721 = vsel %vm1688, %v1664, %v1705
    %v1722 = vsel %vm1689, %v1666, %v1706
    %v1723 = vsel %vm1690, %v1669, %v1707
    %v1724 = vsel %vm1691, %v1671, %v1708
    %v1725 = vsel %vm1692, %v1674, %v1709
    %v1726 = vsel %vm1693, %v1676, %v1710
    %v1727 = vpack.c.bf16 %v1711, %v1711
    %v1728 = vpack.c.bf16 %v1712, %v1712
    %v1729 = vpack.c.bf16 %v1713, %v1713
    %v1730 = vpack.c.bf16 %v1714, %v1714
    %v1731 = vpack.c.bf16 %v1715, %v1715
    %v1732 = vpack.c.bf16 %v1716, %v1716
    %v1733 = vpack.c.bf16 %v1717, %v1717
    %v1734 = vpack.c.bf16 %v1718, %v1718
    %v1735 = vpack.c.bf16 %v1719, %v1719
    %v1736 = vpack.c.bf16 %v1720, %v1720
    %v1737 = vpack.c.bf16 %v1721, %v1721
    %v1738 = vpack.c.bf16 %v1722, %v1722
    %v1739 = vpack.c.bf16 %v1723, %v1723
    %v1740 = vpack.c.bf16 %v1724, %v1724
    %v1741 = vpack.c.bf16 %v1725, %v1725
    %v1742 = vpack.c.bf16 %v1726, %v1726
    %1743 = vst [vmem:[%s18] sm:$0xf] %v1727
    %1744 = vst [vmem:[%s18 + $0x4] sm:$0xf] %v1728
    %1745 = vst [vmem:[%s18 + $0x8] sm:$0xf] %v1729
    %1746 = vst [vmem:[%s18 + $0xc] sm:$0xf] %v1730
    %1747 = vst [vmem:[%s18 + $0x10] sm:$0xf] %v1731
    %1748 = vst [vmem:[%s18 + $0x14] sm:$0xf] %v1732
    %1749 = vst [vmem:[%s18 + $0x18] sm:$0xf] %v1733
    %1750 = vst [vmem:[%s18 + $0x1c] sm:$0xf] %v1734
    %1751 = vst [vmem:[%s18 + $0x20] sm:$0xf] %v1735
    %1752 = vst [vmem:[%s18 + $0x24] sm:$0xf] %v1736
    %1753 = vst [vmem:[%s18 + $0x28] sm:$0xf] %v1737
    %1754 = vst [vmem:[%s18 + $0x2c] sm:$0xf] %v1738
    %1755 = vst [vmem:[%s18 + $0x30] sm:$0xf] %v1739
    %1756 = vst [vmem:[%s18 + $0x34] sm:$0xf] %v1740
    %1757 = vst [vmem:[%s18 + $0x38] sm:$0xf] %v1741
    %1758 = vst [vmem:[%s18 + $0x3c] sm:$0xf] %v1742
    // Predicated region
    $region114: #{bgrl_forward.1} parent=1 // pred_check
      _
    $region115: #{bgrl_forward.1} parent=1 // pred_check_branch
      %1760 = sbr.rel (0) target = $region117
    $region116: #{bgrl_forward.1} parent=1 // pred_region
      _
    $region117: #{bgrl_forward.1} parent=1 // pred_fallthru
      _
    // Predicated region
    $region118: #{bgrl_forward.1} parent=1 // pred_check
      _
    $region119: #{bgrl_forward.1} parent=1 // pred_check_branch
      %1762 = sbr.rel (0) target = $region121
    $region120: #{bgrl_forward.1} parent=1 // pred_region
      _
    $region121: #{bgrl_forward.1} parent=1 // pred_fallthru
      _
    // Predicated region
    $region122: #{bgrl_forward.1} parent=1 // pred_check
      _
    $region123: #{bgrl_forward.1} parent=1 // pred_check_branch
      %1764 = sbr.rel (0) target = $region125
    $region124: #{bgrl_forward.1} parent=1 // pred_region
      _
    $region125: #{bgrl_forward.1} parent=1 // pred_fallthru
      _
    // Predicated region
    $region126: #{bgrl_forward.1} parent=1 // pred_check
      _
    $region127: #{bgrl_forward.1} parent=1 // pred_check_branch
      %1766 = sbr.rel (0) target = $region129
    $region128: #{bgrl_forward.1} parent=1 // pred_region
      _
    $region129: #{bgrl_forward.1} parent=1 // pred_fallthru
      _
    %1767 = vsyncpa [#allocation3], 1
    %1768 = vsyncpa [#allocation7], 1
    %1769 = vsyncpa [#allocation10], 1
    %1770 = vsyncpa [#allocation13], 1
    %1771 = vsyncpa [#allocation16], 1
    %1772 = vsyncpa [#allocation19], 1
    %1773 = vsyncpa [#allocation4], 1

</llo_original>
